<compile_context>
chip_gen: v7x
topology: tpu7x:2x2x1
jax: 0.10.0
libtpu: 0.0.40
codegen_flags: <defaults>
</compile_context>

<pallas_src>
import jax
import jax.numpy as jnp
from jax.experimental import pallas as pl
from jax.experimental.pallas import tpu as pltpu


NEG_SLOPE = 0.01            # F.leaky_relu default negative_slope
NUM_CLASSES = 5             # len(ASSIGNMENTS)
HIDDEN = 3000               # fc2 output size (logical)
HIDDEN_PAD = 3072           # 24 * 128, lane-aligned
CLASSES_PAD = 16            # fc3-weight sublane rows / output width (bf16 tile)
LANE = 128


def _round_up(n, m):
    return ((n + m - 1) // m) * m


def _max_batch_tile():
    """Generation-aware max batch tile: 512 on v6e/v7x (fast MXU, grid-step
    overhead bound at small tiles), 256 on v5e/older (HBM-bandwidth bound)."""
    try:
        kind = jax.devices()[0].device_kind.lower()
    except Exception:
        kind = ""
    if ("v6" in kind) or ("v7" in kind):
        return 512
    return 256


def _choose_batch_tile(B):
    """Returns (TB, n_steps) with n_steps * TB >= B.

    - tiny batches: single tile, rows padded to a bf16 sublane multiple (16).
    - larger batches: at least 2 grid steps (so the `parallel` axis can land on
      both TensorCores on v7x), TB a multiple of 128 and <= the per-generation
      cap so TB-scaled intermediates stay well under v7x's 64 MiB VMEM.
    """
    if B <= 128:
        return _round_up(max(B, 16), 16), 1
    tb_max = _max_batch_tile()
    n_steps = max(2, pl.cdiv(B, tb_max))
    tb = _round_up(pl.cdiv(B, n_steps), 128)
    return tb, n_steps


def _vmem_limit_bytes(tb):
    # TB-scaled budget: ~24 KiB/row of live intermediates (h2 f32 + bf16, h1,
    # x/out double buffers) + ~2 MiB double-buffered weights + headroom.
    return int(min(100 << 20, (8 << 20) + tb * (40 << 10)))


def net_kernel(x_ref, w1_ref, b1_ref, w2_ref, b2_ref, w3t_ref, b3_ref, out_ref):
    """fc1 -> leaky_relu -> fc2 -> fc3 -> log_softmax, all in VMEM.

    Weights are bf16 (f32 accumulation via preferred_element_type), biases f32.
    fc3's weight arrives transposed ([CLASSES_PAD, HIDDEN_PAD]) and is
    contracted with an NT dot_general. Padded class lanes are masked with a
    large finite negative before log_softmax; the wrapper slices [:, :5].
    """
    x = x_ref[...]                                                    # [TB, D] bf16

    # fc1 + leaky_relu (f32 accumulate on MXU, f32 activation math on VPU)
    h1 = jnp.dot(x, w1_ref[...], preferred_element_type=jnp.float32) + b1_ref[...]
    h1 = jnp.where(h1 > 0, h1, NEG_SLOPE * h1)                        # [TB, D]

    # fc2
    h2 = jnp.dot(h1.astype(jnp.bfloat16), w2_ref[...],
                 preferred_element_type=jnp.float32) + b2_ref[...]    # [TB, HIDDEN_PAD]

    # fc3: NT contraction against the compact transposed weight slab.
    logits = jax.lax.dot_general(
        h2.astype(jnp.bfloat16), w3t_ref[...],
        dimension_numbers=(((1,), (1,)), ((), ())),
        preferred_element_type=jnp.float32) + b3_ref[...]             # [TB, CLASSES_PAD]

    # Mask padded class lanes with a large finite negative (not -inf) so they
    # vanish from max/logsumexp and the padded output stays finite.
    lane = jax.lax.broadcasted_iota(jnp.int32, logits.shape, 1)
    logits = jnp.where(lane < NUM_CLASSES, logits, jnp.finfo(jnp.float32).min)

    # Numerically stable log_softmax over the class (last) axis.
    m = jnp.max(logits, axis=-1, keepdims=True)
    shifted = logits - m
    lse = jnp.log(jnp.sum(jnp.exp(shifted), axis=-1, keepdims=True))
    out_ref[...] = shifted - lse


def net_forward(x, params):
    """x: [B, D] float32. params: dict of padded bf16 weights / f32 row biases."""
    w1, b1, w2, b2, w3t, b3 = (params["w1"], params["b1"], params["w2"],
                               params["b2"], params["w3t"], params["b3"])
    B, D = x.shape
    D_pad = w1.shape[0]

    # bf16 activation input (halves the x DMA stream; padded feature columns
    # are zero so the zero-padded w1 rows keep results exact).
    xb = x.astype(jnp.bfloat16)
    if D != D_pad:
        xb = jnp.pad(xb, ((0, 0), (0, D_pad - D)))

    TB, n_steps = _choose_batch_tile(B)
    B_pad = TB * n_steps
    if B_pad != B:
        xb = jnp.pad(xb, ((0, B_pad - B), (0, 0)))

    batch_map = lambda i: (i, 0)
    fixed_map = lambda i: (0, 0)   # grid-invariant: DMA'd once, stays resident
    # (If VMEM ever gets tight, the weight specs could be single-buffered via
    #  pipeline_mode=pl.Buffered(1); not needed at these tile sizes.)

    out_padded = pl.pallas_call(
        net_kernel,
        out_shape=jax.ShapeDtypeStruct((B_pad, CLASSES_PAD), jnp.float32),
        grid=(n_steps,),
        in_specs=[
            pl.BlockSpec((TB, D_pad), batch_map),
            pl.BlockSpec(w1.shape, fixed_map), pl.BlockSpec(b1.shape, fixed_map),
            pl.BlockSpec(w2.shape, fixed_map), pl.BlockSpec(b2.shape, fixed_map),
            pl.BlockSpec(w3t.shape, fixed_map), pl.BlockSpec(b3.shape, fixed_map),
        ],
        out_specs=pl.BlockSpec((TB, CLASSES_PAD), batch_map),
        compiler_params=pltpu.CompilerParams(
            dimension_semantics=("parallel",),
            vmem_limit_bytes=_vmem_limit_bytes(TB),
        ),
    )(xb, w1, b1, w2, b2, w3t, b3)

    # Drop padded batch rows and padded class lanes.
    return out_padded[:B, :NUM_CLASSES]


def init_params(key, input_size):
    """PyTorch-Linear-style init (U[-1/sqrt(fan_in), +]).  fc1/fc2 weights are
    stored transposed to [fan_in, fan_out] and zero-padded to lane-aligned
    shapes; fc3 weight is stored compact as [CLASSES_PAD, HIDDEN_PAD].  All
    weights bf16, biases f32 row vectors."""
    ks = jax.random.split(key, 6)
    D = input_size
    D_pad = _round_up(D, LANE)

    def linear_t(kw, kb, fan_in, fan_out, pad_in, pad_out):
        bound = 1.0 / (float(fan_in) ** 0.5)
        w = jax.random.uniform(kw, (fan_in, fan_out), jnp.float32, -bound, bound)
        b = jax.random.uniform(kb, (1, fan_out), jnp.float32, -bound, bound)
        w = jnp.pad(w, ((0, pad_in - fan_in), (0, pad_out - fan_out)))
        b = jnp.pad(b, ((0, 0), (0, pad_out - fan_out)))
        return w.astype(jnp.bfloat16), b

    w1, b1 = linear_t(ks[0], ks[1], D, D, D_pad, D_pad)
    w2, b2 = linear_t(ks[2], ks[3], D, HIDDEN, D_pad, HIDDEN_PAD)

    bound3 = 1.0 / (float(HIDDEN) ** 0.5)
    w3 = jax.random.uniform(ks[4], (HIDDEN, NUM_CLASSES), jnp.float32, -bound3, bound3)
    b3 = jax.random.uniform(ks[5], (1, NUM_CLASSES), jnp.float32, -bound3, bound3)
    w3t = jnp.pad(w3.T, ((0, CLASSES_PAD - NUM_CLASSES), (0, HIDDEN_PAD - HIDDEN)))
    b3 = jnp.pad(b3, ((0, 0), (0, CLASSES_PAD - NUM_CLASSES)))

    return {"w1": w1, "b1": b1, "w2": w2, "b2": b2,
            "w3t": w3t.astype(jnp.bfloat16), "b3": b3}


def reference_forward(x, p):
    """Pure-JAX reference using the exact same bf16-weight / f32-accumulate math."""
    D_pad = p["w1"].shape[0]
    xb = x.astype(jnp.bfloat16)
    if xb.shape[1] != D_pad:
        xb = jnp.pad(xb, ((0, 0), (0, D_pad - xb.shape[1])))
    h1 = jnp.dot(xb, p["w1"], preferred_element_type=jnp.float32) + p["b1"]
    h1 = jnp.where(h1 > 0, h1, NEG_SLOPE * h1)
    h2 = jnp.dot(h1.astype(jnp.bfloat16), p["w2"],
                 preferred_element_type=jnp.float32) + p["b2"]
    logits = jnp.dot(h2.astype(jnp.bfloat16), p["w3t"].T,
                     preferred_element_type=jnp.float32) + p["b3"]
    logits = logits[:, :NUM_CLASSES]
    return jax.nn.log_softmax(logits, axis=-1)


if __name__ == "__main__":
    INPUT_SIZE = 128

    key = jax.random.PRNGKey(0)
    kx, kx2, kp = jax.random.split(key, 3)
    params = init_params(kp, INPUT_SIZE)

    # 1) Tiny batch: single-tile path (rows padded to a bf16 sublane multiple).
    x = jax.random.normal(kx, (8, INPUT_SIZE), jnp.float32)
    out = jax.block_until_ready(net_forward(x, params))
    ref = jax.block_until_ready(reference_forward(x, params))
    assert out.shape == (8, NUM_CLASSES)
    assert bool(jnp.all(jnp.isfinite(out))), "non-finite values in output"
    assert jnp.allclose(out, ref, atol=5e-3, rtol=5e-3), "mismatch vs reference (B=8)"

    # 2) Non-tile-multiple batch: exercises host-side batch padding + the
    #    multi-step (>=2 grid steps) pipelined path.
    x2 = jax.random.normal(kx2, (192, INPUT_SIZE), jnp.float32)
    out2 = jax.block_until_ready(net_forward(x2, params))
    ref2 = jax.block_until_ready(reference_forward(x2, params))
    assert out2.shape == (192, NUM_CLASSES)
    assert bool(jnp.all(jnp.isfinite(out2))), "non-finite values in output"
    assert jnp.allclose(out2, ref2, atol=5e-3, rtol=5e-3), "mismatch vs reference (B=192)"

    print("KERNEL_OK")
</pallas_src>

<mosaic_0001>
module attributes {stable_mosaic.version = 11 : i64} {
  func.func @net_kernel(%arg0: i32, %arg1: memref<16x128xbf16, #tpu.memory_space<vmem>>, %arg2: memref<128x128xbf16, #tpu.memory_space<vmem>>, %arg3: memref<1x128xf32, #tpu.memory_space<vmem>>, %arg4: memref<128x3072xbf16, #tpu.memory_space<vmem>>, %arg5: memref<1x3072xf32, #tpu.memory_space<vmem>>, %arg6: memref<16x3072xbf16, #tpu.memory_space<vmem>>, %arg7: memref<1x16xf32, #tpu.memory_space<vmem>>, %arg8: memref<16x16xf32, #tpu.memory_space<vmem>>) attributes {dimension_semantics = [#tpu.dimension_semantics<parallel>], iteration_bounds = array<i64: 1>, scalar_prefetch = 0 : i64, scratch_operands = 0 : i64, tpu.core_type = #tpu.core_type<tc>, window_params = [{transform_indices = @transform_0, window_bounds = array<i64: 16, 128>}, {pipeline_mode = #tpu.pipeline_mode<synchronous>, transform_indices = @transform_1, window_bounds = array<i64: 128, 128>}, {pipeline_mode = #tpu.pipeline_mode<synchronous>, transform_indices = @transform_2, window_bounds = array<i64: 1, 128>}, {pipeline_mode = #tpu.pipeline_mode<synchronous>, transform_indices = @transform_3, window_bounds = array<i64: 128, 3072>}, {pipeline_mode = #tpu.pipeline_mode<synchronous>, transform_indices = @transform_4, window_bounds = array<i64: 1, 3072>}, {pipeline_mode = #tpu.pipeline_mode<synchronous>, transform_indices = @transform_5, window_bounds = array<i64: 16, 3072>}, {pipeline_mode = #tpu.pipeline_mode<synchronous>, transform_indices = @transform_6, window_bounds = array<i64: 1, 16>}, {transform_indices = @transform_7, window_bounds = array<i64: 16, 16>}]} {
    %c0 = arith.constant 0 : index
    %c0_0 = arith.constant 0 : index
    %0 = vector.load %arg1[%c0, %c0_0] : memref<16x128xbf16, #tpu.memory_space<vmem>>, vector<16x128xbf16>
    %c0_1 = arith.constant 0 : index
    %c0_2 = arith.constant 0 : index
    %1 = vector.load %arg2[%c0_1, %c0_2] : memref<128x128xbf16, #tpu.memory_space<vmem>>, vector<128x128xbf16>
    %cst = arith.constant dense<0.000000e+00> : vector<16x128xf32>
    %2 = tpu.matmul %0, %1, %cst {dimension_numbers = #tpu.dot_dimension_numbers<[1], [0], [0], [1], [0, 0, 1, 1], [], []>} : vector<16x128xbf16>, vector<128x128xbf16>, vector<16x128xf32> -> vector<16x128xf32>
    %c0_3 = arith.constant 0 : index
    %c0_4 = arith.constant 0 : index
    %3 = vector.load %arg3[%c0_3, %c0_4] : memref<1x128xf32, #tpu.memory_space<vmem>>, vector<1x128xf32>
    %4 = vector.broadcast %3 : vector<1x128xf32> to vector<16x128xf32>
    %5 = arith.addf %2, %4 : vector<16x128xf32>
    %cst_5 = arith.constant 0.000000e+00 : f32
    %6 = vector.broadcast %cst_5 : f32 to vector<16x128xf32>
    %7 = arith.cmpf ogt, %5, %6 : vector<16x128xf32>
    %cst_6 = arith.constant 0.00999999977 : f32
    %8 = vector.broadcast %cst_6 : f32 to vector<16x128xf32>
    %9 = arith.mulf %8, %5 : vector<16x128xf32>
    %10 = arith.select %7, %5, %9 : vector<16x128xi1>, vector<16x128xf32>
    %11 = arith.truncf %10 : vector<16x128xf32> to vector<16x128xbf16>
    %c0_7 = arith.constant 0 : index
    %c0_8 = arith.constant 0 : index
    %12 = vector.load %arg4[%c0_7, %c0_8] : memref<128x3072xbf16, #tpu.memory_space<vmem>>, vector<128x3072xbf16>
    %cst_9 = arith.constant dense<0.000000e+00> : vector<16x3072xf32>
    %13 = tpu.matmul %11, %12, %cst_9 {dimension_numbers = #tpu.dot_dimension_numbers<[1], [0], [0], [1], [0, 0, 1, 1], [], []>} : vector<16x128xbf16>, vector<128x3072xbf16>, vector<16x3072xf32> -> vector<16x3072xf32>
    %c0_10 = arith.constant 0 : index
    %c0_11 = arith.constant 0 : index
    %14 = vector.load %arg5[%c0_10, %c0_11] : memref<1x3072xf32, #tpu.memory_space<vmem>>, vector<1x3072xf32>
    %15 = vector.broadcast %14 : vector<1x3072xf32> to vector<16x3072xf32>
    %16 = arith.addf %13, %15 : vector<16x3072xf32>
    %17 = arith.truncf %16 : vector<16x3072xf32> to vector<16x3072xbf16>
    %c0_12 = arith.constant 0 : index
    %c0_13 = arith.constant 0 : index
    %18 = vector.load %arg6[%c0_12, %c0_13] : memref<16x3072xbf16, #tpu.memory_space<vmem>>, vector<16x3072xbf16>
    %cst_14 = arith.constant dense<0.000000e+00> : vector<16x16xf32>
    %19 = tpu.matmul %17, %18, %cst_14 {dimension_numbers = #tpu.dot_dimension_numbers<[1], [1], [0], [0], [0, 0, 1, 0], [], []>} : vector<16x3072xbf16>, vector<16x3072xbf16>, vector<16x16xf32> -> vector<16x16xf32>
    %c0_15 = arith.constant 0 : index
    %c0_16 = arith.constant 0 : index
    %20 = vector.load %arg7[%c0_15, %c0_16] : memref<1x16xf32, #tpu.memory_space<vmem>>, vector<1x16xf32>
    %21 = vector.broadcast %20 : vector<1x16xf32> to vector<16x16xf32>
    %22 = arith.addf %19, %21 : vector<16x16xf32>
    %23 = tpu.iota {dimensions = array<i32: 1>} : vector<16x16xi32>
    %c5_i32 = arith.constant 5 : i32
    %24 = vector.broadcast %c5_i32 : i32 to vector<16x16xi32>
    %25 = arith.cmpi slt, %23, %24 : vector<16x16xi32>
    %cst_17 = arith.constant -3.40282347E+38 : f32
    %26 = vector.broadcast %cst_17 : f32 to vector<16x16xf32>
    %27 = arith.select %25, %22, %26 : vector<16x16xi1>, vector<16x16xf32>
    %cst_18 = arith.constant dense<0xFF800000> : vector<16xf32>
    %28 = vector.multi_reduction <maximumf>, %27, %cst_18 [1] : vector<16x16xf32> to vector<16xf32>
    %29 = vector.shape_cast %28 : vector<16xf32> to vector<16x1xf32>
    %30 = vector.broadcast %29 : vector<16x1xf32> to vector<16x16xf32>
    %31 = arith.subf %27, %30 : vector<16x16xf32>
    %32 = math.exp %31 : vector<16x16xf32>
    %cst_19 = arith.constant dense<0.000000e+00> : vector<16xf32>
    %33 = vector.multi_reduction <add>, %32, %cst_19 [1] : vector<16x16xf32> to vector<16xf32>
    %34 = vector.shape_cast %33 : vector<16xf32> to vector<16x1xf32>
    %35 = math.log %34 : vector<16x1xf32>
    %36 = vector.broadcast %35 : vector<16x1xf32> to vector<16x16xf32>
    %37 = arith.subf %31, %36 : vector<16x16xf32>
    %c0_20 = arith.constant 0 : index
    %c0_21 = arith.constant 0 : index
    %38 = vector.load %arg8[%c0_20, %c0_21] : memref<16x16xf32, #tpu.memory_space<vmem>>, vector<16x16xf32>
    tpu.vector_store %arg8[%c0_20, %c0_21], %37 {strides = array<i32>} : memref<16x16xf32, #tpu.memory_space<vmem>>, vector<16x16xf32>,
    return
  }
  func.func @transform_0(%arg0: i32) -> (i32, i32) {
    %c0_i32 = arith.constant 0 : i32
    %c0_i32_0 = arith.constant 0 : i32
    return %arg0, %c0_i32 : i32, i32
  }
  func.func @transform_1(%arg0: i32) -> (i32, i32) {
    %c0_i32 = arith.constant 0 : i32
    %c0_i32_0 = arith.constant 0 : i32
    %c0_i32_1 = arith.constant 0 : i32
    return %c0_i32, %c0_i32_0 : i32, i32
  }
  func.func @transform_2(%arg0: i32) -> (i32, i32) {
    %c0_i32 = arith.constant 0 : i32
    %c0_i32_0 = arith.constant 0 : i32
    %c0_i32_1 = arith.constant 0 : i32
    return %c0_i32, %c0_i32_0 : i32, i32
  }
  func.func @transform_3(%arg0: i32) -> (i32, i32) {
    %c0_i32 = arith.constant 0 : i32
    %c0_i32_0 = arith.constant 0 : i32
    %c0_i32_1 = arith.constant 0 : i32
    return %c0_i32, %c0_i32_0 : i32, i32
  }
  func.func @transform_4(%arg0: i32) -> (i32, i32) {
    %c0_i32 = arith.constant 0 : i32
    %c0_i32_0 = arith.constant 0 : i32
    %c0_i32_1 = arith.constant 0 : i32
    return %c0_i32, %c0_i32_0 : i32, i32
  }
  func.func @transform_5(%arg0: i32) -> (i32, i32) {
    %c0_i32 = arith.constant 0 : i32
    %c0_i32_0 = arith.constant 0 : i32
    %c0_i32_1 = arith.constant 0 : i32
    return %c0_i32, %c0_i32_0 : i32, i32
  }
  func.func @transform_6(%arg0: i32) -> (i32, i32) {
    %c0_i32 = arith.constant 0 : i32
    %c0_i32_0 = arith.constant 0 : i32
    %c0_i32_1 = arith.constant 0 : i32
    return %c0_i32, %c0_i32_0 : i32, i32
  }
  func.func @transform_7(%arg0: i32) -> (i32, i32) {
    %c0_i32 = arith.constant 0 : i32
    %c0_i32_0 = arith.constant 0 : i32
    return %arg0, %c0_i32 : i32, i32
  }
}

</mosaic_0001>

<llo_original>
// kernel: tpu_custom_call.1
$region0: #{tpu_custom_call.1}
  #allocation0 [shape = 'u32[]', space=smem, size = 0x4, offset = 0x4, fixed_abs, tag = 'smem constant byte address 0x4 - core index']
  #allocation1 [shape = 'u32[144,128]{1,0:T(1,128)}', space=vmem, size = 0x12000, scoped, tag = 'internal scratch']
  %s0 = inlined_call_operand.hbm [shape: bf16[16,128], index: 0, kind: input, shape index: {}]
  %s1 = inlined_call_operand.hbm [shape: bf16[128,128], index: 1, kind: input, shape index: {}]
  %s2 = inlined_call_operand.vmem [shape: f32[1,128], index: 2, kind: input, shape index: {}]
  %s3 = inlined_call_operand.hbm [shape: bf16[128,3072], index: 3, kind: input, shape index: {}]
  %s4 = inlined_call_operand.hbm [shape: f32[1,3072], index: 4, kind: input, shape index: {}]
  %s5 = inlined_call_operand.hbm [shape: bf16[16,3072], index: 5, kind: input, shape index: {}]
  %s6 = inlined_call_operand.vmem [shape: f32[1,16], index: 6, kind: input, shape index: {}]
  %s7 = inlined_call_operand.hbm [shape: f32[16,16], index: 7, kind: output, shape index: {}]
  %s8 = sld [smem:[#allocation0]]
  $region58: #{tpu_custom_call.1} parent=0
    _
  %s10 = ssub.s32 1, %s8
  %s11 = scalar_select 0, %s10, %s8
  $region1: #{tpu_custom_call.1} parent=0
    #allocation2 [shape = 'u8[4096]{0}', space=vmem, size = 0x1000, scoped, tag = 'input window, operand 0, single buffered']
    #allocation3 [shape = 's32[1]{0}', space=sflag, size = 0x4, scoped, tag = 'scoped memory for tpu_custom_call.1']
    #allocation4 [shape = 's32[1]{0}', space=sflag, size = 0x4, scoped, tag = 'scoped memory for tpu_custom_call.1']
    #allocation5 [shape = 'u8[32768]{0}', space=vmem, size = 0x8000, scoped, tag = 'input window, operand 1, single buffered']
    #allocation6 [shape = 's32[1]{0}', space=sflag, size = 0x4, scoped, tag = 'scoped memory for tpu_custom_call.1']
    #allocation7 [shape = 'u8[786432]{0}', space=vmem, size = 0xc0000, scoped, tag = 'input window, operand 3, single buffered']
    #allocation8 [shape = 'u8[12288]{0}', space=vmem, size = 0x3000, scoped, tag = 'input window, operand 4, single buffered']
    #allocation9 [shape = 's32[1]{0}', space=sflag, size = 0x4, scoped, tag = 'scoped memory for tpu_custom_call.1']
    #allocation10 [shape = 'u8[98304]{0}', space=vmem, size = 0x18000, scoped, tag = 'input window, operand 5, single buffered']
    #allocation11 [shape = 'u8[8192]{0}', space=vmem, size = 0x2000, scoped, tag = 'output window, operand 0, single buffered']
    %12 = vsyncpa [#allocation3], 0
    %13 = vsyncpa [#allocation6], 0
    %14 = vsyncpa [#allocation9], 0
    %15 = vsyncpa [#allocation4], 0
    // Predicated region
    $region2: #{tpu_custom_call.1} parent=1 // pred_check
      _
    $region3: #{tpu_custom_call.1} parent=1 // pred_check_branch
      %17 = sbr.rel (0) target = $region5
    $region4: #{tpu_custom_call.1} parent=1 // pred_region
      %s19 = ssub.s32 128, 128
      %20 = vsyncadd [#allocation3], %s19
      %s21 = sshll.u32 [#allocation2], 4
      %s22 = int_to_ptr.vmem [resolvable:$true] %s21
      %27 = dma.hbm_to_vmem [thread:$0]  %s0, 128, %s22, [#allocation3], 64, 64, 4
    $region5: #{tpu_custom_call.1} parent=1 // pred_fallthru
      _
    // Predicated region
    $region6: #{tpu_custom_call.1} parent=1 // pred_check
      _
    $region7: #{tpu_custom_call.1} parent=1 // pred_check_branch
      %29 = sbr.rel (0) target = $region9
    $region8: #{tpu_custom_call.1} parent=1 // pred_region
      %s31 = ssub.s32 1024, 1024
      %32 = vsyncadd [#allocation6], %s31
      %s33 = sshll.u32 [#allocation5], 4
      %s34 = int_to_ptr.vmem [resolvable:$true] %s33
      %39 = dma.hbm_to_vmem [thread:$0]  %s1, 1024, %s34, [#allocation6], 64, 64, 4
    $region9: #{tpu_custom_call.1} parent=1 // pred_fallthru
      _
    // Predicated region
    $region10: #{tpu_custom_call.1} parent=1 // pred_check
      _
    $region11: #{tpu_custom_call.1} parent=1 // pred_check_branch
      %41 = sbr.rel (0) target = $region13
    $region12: #{tpu_custom_call.1} parent=1 // pred_region
      _
    $region13: #{tpu_custom_call.1} parent=1 // pred_fallthru
      _
    // Predicated region
    $region14: #{tpu_custom_call.1} parent=1 // pred_check
      _
    $region15: #{tpu_custom_call.1} parent=1 // pred_check_branch
      %43 = sbr.rel (0) target = $region17
    $region16: #{tpu_custom_call.1} parent=1 // pred_region
      %s45 = ssub.s32 24576, 24576
      %46 = vsyncadd [#allocation6], %s45
      %s47 = sshll.u32 [#allocation7], 4
      %s48 = int_to_ptr.vmem [resolvable:$true] %s47
      %53 = dma.hbm_to_vmem [thread:$0]  %s3, 24576, %s48, [#allocation6], 1536, 1536, 96
    $region17: #{tpu_custom_call.1} parent=1 // pred_fallthru
      _
    // Predicated region
    $region18: #{tpu_custom_call.1} parent=1 // pred_check
      _
    $region19: #{tpu_custom_call.1} parent=1 // pred_check_branch
      %55 = sbr.rel (0) target = $region21
    $region20: #{tpu_custom_call.1} parent=1 // pred_region
      %s57 = ssub.s32 384, 384
      %58 = vsyncadd [#allocation9], %s57
      %s60 = sshll.u32 [#allocation8], 4
      %s61 = int_to_ptr.vmem [resolvable:$true] %s60
      %63 = dma.hbm_to_vmem [thread:$0]  %s4, 384, %s61, [#allocation9]
    $region21: #{tpu_custom_call.1} parent=1 // pred_fallthru
      _
    // Predicated region
    $region22: #{tpu_custom_call.1} parent=1 // pred_check
      _
    $region23: #{tpu_custom_call.1} parent=1 // pred_check_branch
      %65 = sbr.rel (0) target = $region25
    $region24: #{tpu_custom_call.1} parent=1 // pred_region
      %s67 = ssub.s32 3072, 3072
      %68 = vsyncadd [#allocation9], %s67
      %s69 = sshll.u32 [#allocation10], 4
      %s70 = int_to_ptr.vmem [resolvable:$true] %s69
      %75 = dma.hbm_to_vmem [thread:$0]  %s5, 3072, %s70, [#allocation9], 1536, 1536, 96
    $region25: #{tpu_custom_call.1} parent=1 // pred_fallthru
      _
    // Predicated region
    $region26: #{tpu_custom_call.1} parent=1 // pred_check
      _
    $region27: #{tpu_custom_call.1} parent=1 // pred_check_branch
      %77 = sbr.rel (0) target = $region29
    $region28: #{tpu_custom_call.1} parent=1 // pred_region
      _
    $region29: #{tpu_custom_call.1} parent=1 // pred_fallthru
      _
    // Predicated region
    $region30: #{tpu_custom_call.1} parent=1 // pred_check
      _
    $region31: #{tpu_custom_call.1} parent=1 // pred_check_branch
      %79 = sbr.rel (0) target = $region33
    $region32: #{tpu_custom_call.1} parent=1 // pred_region
      %80 = dma.done [#allocation3], 128
    $region33: #{tpu_custom_call.1} parent=1 // pred_fallthru
      _
    // Predicated region
    $region34: #{tpu_custom_call.1} parent=1 // pred_check
      _
    $region35: #{tpu_custom_call.1} parent=1 // pred_check_branch
      %82 = sbr.rel (0) target = $region37
    $region36: #{tpu_custom_call.1} parent=1 // pred_region
      %83 = dma.done [#allocation6], 1024
    $region37: #{tpu_custom_call.1} parent=1 // pred_fallthru
      _
    // Predicated region
    $region38: #{tpu_custom_call.1} parent=1 // pred_check
      _
    $region39: #{tpu_custom_call.1} parent=1 // pred_check_branch
      %85 = sbr.rel (0) target = $region41
    $region40: #{tpu_custom_call.1} parent=1 // pred_region
      %86 = dma.done [#allocation6], 24576
    $region41: #{tpu_custom_call.1} parent=1 // pred_fallthru
      _
    // Predicated region
    $region42: #{tpu_custom_call.1} parent=1 // pred_check
      _
    $region43: #{tpu_custom_call.1} parent=1 // pred_check_branch
      %88 = sbr.rel (0) target = $region45
    $region44: #{tpu_custom_call.1} parent=1 // pred_region
      %89 = dma.done [#allocation9], 384
    $region45: #{tpu_custom_call.1} parent=1 // pred_fallthru
      _
    // Predicated region
    $region46: #{tpu_custom_call.1} parent=1 // pred_check
      _
    $region47: #{tpu_custom_call.1} parent=1 // pred_check_branch
      %91 = sbr.rel (0) target = $region49
    $region48: #{tpu_custom_call.1} parent=1 // pred_region
      %92 = dma.done [#allocation9], 3072
    $region49: #{tpu_custom_call.1} parent=1 // pred_fallthru
      _
    %v94 = vld [vmem:[#allocation2] sm:$0xf]
    %v95 = vld [vmem:[#allocation2 + $0x4] sm:$0xf]
    %v96 = vld [vmem:[#allocation5] sm:$0xf]
    %v97 = vld [vmem:[#allocation5 + $0x4] sm:$0xf]
    %v98 = vld [vmem:[#allocation5 + $0x8] sm:$0xf]
    %v99 = vld [vmem:[#allocation5 + $0xc] sm:$0xf]
    %v100 = vld [vmem:[#allocation5 + $0x10] sm:$0xf]
    %v101 = vld [vmem:[#allocation5 + $0x14] sm:$0xf]
    %v102 = vld [vmem:[#allocation5 + $0x18] sm:$0xf]
    %v103 = vld [vmem:[#allocation5 + $0x1c] sm:$0xf]
    %v104 = vld [vmem:[#allocation5 + $0x20] sm:$0xf]
    %v105 = vld [vmem:[#allocation5 + $0x24] sm:$0xf]
    %v106 = vld [vmem:[#allocation5 + $0x28] sm:$0xf]
    %v107 = vld [vmem:[#allocation5 + $0x2c] sm:$0xf]
    %v108 = vld [vmem:[#allocation5 + $0x30] sm:$0xf]
    %v109 = vld [vmem:[#allocation5 + $0x34] sm:$0xf]
    %v110 = vld [vmem:[#allocation5 + $0x38] sm:$0xf]
    %v111 = vld [vmem:[#allocation5 + $0x3c] sm:$0xf]
    %v112 = vld [vmem:[%s2] sm:$0x1]
    %v114 = vlaneseq
    %v115 = vshrl.u32 %v114, 7
    %v116 = vsub.s32 0, %v115
    %v117 = vrot.slane %v112, %v116
    %v121 = vunpack.c.l.b16 %v94
    %v122 = vunpack.c.l.b16 %v95
    %v123 = vpack.c.b16 %v122, %v121
    %v141 = vunpack.c.l.b16 %v96
    %v142 = vunpack.c.l.b16 %v97
    %v143 = vunpack.c.l.b16 %v98
    %v144 = vunpack.c.l.b16 %v99
    %v145 = vunpack.c.l.b16 %v100
    %v146 = vunpack.c.l.b16 %v101
    %v147 = vunpack.c.l.b16 %v102
    %v148 = vunpack.c.l.b16 %v103
    %v149 = vunpack.c.l.b16 %v104
    %v150 = vunpack.c.l.b16 %v105
    %v151 = vunpack.c.l.b16 %v106
    %v152 = vunpack.c.l.b16 %v107
    %v153 = vunpack.c.l.b16 %v108
    %v154 = vunpack.c.l.b16 %v109
    %v155 = vunpack.c.l.b16 %v110
    %v156 = vunpack.c.l.b16 %v111
    %v157 = vpack.c.b16 %v142, %v141
    %v158 = vpack.c.b16 %v144, %v143
    %v159 = vpack.c.b16 %v146, %v145
    %v160 = vpack.c.b16 %v148, %v147
    %v161 = vpack.c.b16 %v150, %v149
    %v162 = vpack.c.b16 %v152, %v151
    %v163 = vpack.c.b16 %v154, %v153
    %v164 = vpack.c.b16 %v156, %v155
    %173 = vmatprep.subr.bf16.mxu0 0
    %174 = vmatpush1.bf16.msra.mxu0 %v157
    %175 = vmatprep.subr.bf16.mxu0 0
    %176 = vmatpush1.bf16.msra.mxu0 %v158
    %177 = vmatprep.subr.bf16.mxu0 0
    %178 = vmatpush1.bf16.msra.mxu0 %v159
    %179 = vmatprep.subr.bf16.mxu0 0
    %180 = vmatpush1.bf16.msra.mxu0 %v160
    %181 = vmatprep.subr.bf16.mxu0 0
    %182 = vmatpush1.bf16.msra.mxu0 %v161
    %183 = vmatprep.subr.bf16.mxu0 0
    %184 = vmatpush1.bf16.msra.mxu0 %v162
    %185 = vmatprep.subr.bf16.mxu0 0
    %186 = vmatpush1.bf16.msra.mxu0 %v163
    %187 = vmatprep.subr.bf16.mxu0 0
    %188 = vmatpush1.bf16.msra.mxu0 %v164
    %189 = vmatprep.subr.bf16.mxu0 0
    %190 = vmatpush1.bf16.msra.mxu0 0
    %191 = vmatprep.subr.bf16.mxu0 0
    %192 = vmatpush1.bf16.msra.mxu0 0
    %193 = vmatprep.subr.bf16.mxu0 0
    %194 = vmatpush1.bf16.msra.mxu0 0
    %195 = vmatprep.subr.bf16.mxu0 0
    %196 = vmatpush1.bf16.msra.mxu0 0
    %197 = vmatprep.subr.bf16.mxu0 0
    %198 = vmatpush1.bf16.msra.mxu0 0
    %199 = vmatprep.subr.bf16.mxu0 0
    %200 = vmatpush1.bf16.msra.mxu0 0
    %201 = vmatprep.subr.bf16.mxu0 0
    %202 = vmatpush1.bf16.msra.mxu0 0
    %203 = vmatprep.subr.bf16.mxu0 0
    %204 = vmatpush1.bf16.msra.mxu0 0
    %205 = vmatprep.mubr.bf16.mxu0 0
    %206 = vmatmul.mubr.bf16.gmra.mrb[0].mxu0 %v123
    %v207 = vpop.f32.mrb[0].mxu0
    %v208 = vadd.f32 %v117, %v207
    %v209 = vpop.f32.mrb[0].mxu0
    %v210 = vpop.f32.mrb[0].mxu0
    %v211 = vadd.f32 %v117, %v210
    %v212 = vpop.f32.mrb[0].mxu0
    %213 = vdwg.mxu0
    %vm214 = vcmp.gt.f32.partialorder %v208, 0.0
    %vm215 = vcmp.gt.f32.partialorder %v211, 0.0
    %v216 = vmul.f32 %v208, 0.01
    %v217 = vmul.f32 %v211, 0.01
    %v218 = vsel %vm214, %v208, %v216
    %v219 = vsel %vm215, %v211, %v217
    %v220 = vpack.c.bf16 %v219, %v218
    %v221 = vld [vmem:[#allocation7] sm:$0xff]
    %v222 = vld [vmem:[#allocation7 + $0x8] sm:$0xff]
    %v223 = vld [vmem:[#allocation7 + $0x10] sm:$0xff]
    %v224 = vld [vmem:[#allocation7 + $0x18] sm:$0xff]
    %v225 = vld [vmem:[#allocation7 + $0x20] sm:$0xff]
    %v226 = vld [vmem:[#allocation7 + $0x28] sm:$0xff]
    %v227 = vld [vmem:[#allocation7 + $0x30] sm:$0xff]
    %v228 = vld [vmem:[#allocation7 + $0x38] sm:$0xff]
    %v229 = vld [vmem:[#allocation7 + $0x40] sm:$0xff]
    %v230 = vld [vmem:[#allocation7 + $0x48] sm:$0xff]
    %v231 = vld [vmem:[#allocation7 + $0x50] sm:$0xff]
    %v232 = vld [vmem:[#allocation7 + $0x58] sm:$0xff]
    %v233 = vld [vmem:[#allocation7 + $0x60] sm:$0xff]
    %v234 = vld [vmem:[#allocation7 + $0x68] sm:$0xff]
    %v235 = vld [vmem:[#allocation7 + $0x70] sm:$0xff]
    %v236 = vld [vmem:[#allocation7 + $0x78] sm:$0xff]
    %v237 = vld [vmem:[#allocation7 + $0x80] sm:$0xff]
    %v238 = vld [vmem:[#allocation7 + $0x88] sm:$0xff]
    %v239 = vld [vmem:[#allocation7 + $0x90] sm:$0xff]
    %v240 = vld [vmem:[#allocation7 + $0x98] sm:$0xff]
    %v241 = vld [vmem:[#allocation7 + $0xa0] sm:$0xff]
    %v242 = vld [vmem:[#allocation7 + $0xa8] sm:$0xff]
    %v243 = vld [vmem:[#allocation7 + $0xb0] sm:$0xff]
    %v244 = vld [vmem:[#allocation7 + $0xb8] sm:$0xff]
    %v245 = vld [vmem:[#allocation7 + $0xc0] sm:$0xff]
    %v246 = vld [vmem:[#allocation7 + $0xc8] sm:$0xff]
    %v247 = vld [vmem:[#allocation7 + $0xd0] sm:$0xff]
    %v248 = vld [vmem:[#allocation7 + $0xd8] sm:$0xff]
    %v249 = vld [vmem:[#allocation7 + $0xe0] sm:$0xff]
    %v250 = vld [vmem:[#allocation7 + $0xe8] sm:$0xff]
    %v251 = vld [vmem:[#allocation7 + $0xf0] sm:$0xff]
    %v252 = vld [vmem:[#allocation7 + $0xf8] sm:$0xff]
    %v253 = vld [vmem:[#allocation7 + $0x100] sm:$0xff]
    %v254 = vld [vmem:[#allocation7 + $0x108] sm:$0xff]
    %v255 = vld [vmem:[#allocation7 + $0x110] sm:$0xff]
    %v256 = vld [vmem:[#allocation7 + $0x118] sm:$0xff]
    %v257 = vld [vmem:[#allocation7 + $0x120] sm:$0xff]
    %v258 = vld [vmem:[#allocation7 + $0x128] sm:$0xff]
    %v259 = vld [vmem:[#allocation7 + $0x130] sm:$0xff]
    %v260 = vld [vmem:[#allocation7 + $0x138] sm:$0xff]
    %v261 = vld [vmem:[#allocation7 + $0x140] sm:$0xff]
    %v262 = vld [vmem:[#allocation7 + $0x148] sm:$0xff]
    %v263 = vld [vmem:[#allocation7 + $0x150] sm:$0xff]
    %v264 = vld [vmem:[#allocation7 + $0x158] sm:$0xff]
    %v265 = vld [vmem:[#allocation7 + $0x160] sm:$0xff]
    %v266 = vld [vmem:[#allocation7 + $0x168] sm:$0xff]
    %v267 = vld [vmem:[#allocation7 + $0x170] sm:$0xff]
    %v268 = vld [vmem:[#allocation7 + $0x178] sm:$0xff]
    %v269 = vld [vmem:[#allocation7 + $0x180] sm:$0xff]
    %v270 = vld [vmem:[#allocation7 + $0x188] sm:$0xff]
    %v271 = vld [vmem:[#allocation7 + $0x190] sm:$0xff]
    %v272 = vld [vmem:[#allocation7 + $0x198] sm:$0xff]
    %v273 = vld [vmem:[#allocation7 + $0x1a0] sm:$0xff]
    %v274 = vld [vmem:[#allocation7 + $0x1a8] sm:$0xff]
    %v275 = vld [vmem:[#allocation7 + $0x1b0] sm:$0xff]
    %v276 = vld [vmem:[#allocation7 + $0x1b8] sm:$0xff]
    %v277 = vld [vmem:[#allocation7 + $0x1c0] sm:$0xff]
    %v278 = vld [vmem:[#allocation7 + $0x1c8] sm:$0xff]
    %v279 = vld [vmem:[#allocation7 + $0x1d0] sm:$0xff]
    %v280 = vld [vmem:[#allocation7 + $0x1d8] sm:$0xff]
    %v281 = vld [vmem:[#allocation7 + $0x1e0] sm:$0xff]
    %v282 = vld [vmem:[#allocation7 + $0x1e8] sm:$0xff]
    %v283 = vld [vmem:[#allocation7 + $0x1f0] sm:$0xff]
    %v284 = vld [vmem:[#allocation7 + $0x1f8] sm:$0xff]
    %v285 = vld [vmem:[#allocation7 + $0x200] sm:$0xff]
    %v286 = vld [vmem:[#allocation7 + $0x208] sm:$0xff]
    %v287 = vld [vmem:[#allocation7 + $0x210] sm:$0xff]
    %v288 = vld [vmem:[#allocation7 + $0x218] sm:$0xff]
    %v289 = vld [vmem:[#allocation7 + $0x220] sm:$0xff]
    %v290 = vld [vmem:[#allocation7 + $0x228] sm:$0xff]
    %v291 = vld [vmem:[#allocation7 + $0x230] sm:$0xff]
    %v292 = vld [vmem:[#allocation7 + $0x238] sm:$0xff]
    %v293 = vld [vmem:[#allocation7 + $0x240] sm:$0xff]
    %v294 = vld [vmem:[#allocation7 + $0x248] sm:$0xff]
    %v295 = vld [vmem:[#allocation7 + $0x250] sm:$0xff]
    %v296 = vld [vmem:[#allocation7 + $0x258] sm:$0xff]
    %v297 = vld [vmem:[#allocation7 + $0x260] sm:$0xff]
    %v298 = vld [vmem:[#allocation7 + $0x268] sm:$0xff]
    %v299 = vld [vmem:[#allocation7 + $0x270] sm:$0xff]
    %v300 = vld [vmem:[#allocation7 + $0x278] sm:$0xff]
    %v301 = vld [vmem:[#allocation7 + $0x280] sm:$0xff]
    %v302 = vld [vmem:[#allocation7 + $0x288] sm:$0xff]
    %v303 = vld [vmem:[#allocation7 + $0x290] sm:$0xff]
    %v304 = vld [vmem:[#allocation7 + $0x298] sm:$0xff]
    %v305 = vld [vmem:[#allocation7 + $0x2a0] sm:$0xff]
    %v306 = vld [vmem:[#allocation7 + $0x2a8] sm:$0xff]
    %v307 = vld [vmem:[#allocation7 + $0x2b0] sm:$0xff]
    %v308 = vld [vmem:[#allocation7 + $0x2b8] sm:$0xff]
    %v309 = vld [vmem:[#allocation7 + $0x2c0] sm:$0xff]
    %v310 = vld [vmem:[#allocation7 + $0x2c8] sm:$0xff]
    %v311 = vld [vmem:[#allocation7 + $0x2d0] sm:$0xff]
    %v312 = vld [vmem:[#allocation7 + $0x2d8] sm:$0xff]
    %v313 = vld [vmem:[#allocation7 + $0x2e0] sm:$0xff]
    %v314 = vld [vmem:[#allocation7 + $0x2e8] sm:$0xff]
    %v315 = vld [vmem:[#allocation7 + $0x2f0] sm:$0xff]
    %v316 = vld [vmem:[#allocation7 + $0x2f8] sm:$0xff]
    %v317 = vld [vmem:[#allocation7 + $0x300] sm:$0xff]
    %v318 = vld [vmem:[#allocation7 + $0x308] sm:$0xff]
    %v319 = vld [vmem:[#allocation7 + $0x310] sm:$0xff]
    %v320 = vld [vmem:[#allocation7 + $0x318] sm:$0xff]
    %v321 = vld [vmem:[#allocation7 + $0x320] sm:$0xff]
    %v322 = vld [vmem:[#allocation7 + $0x328] sm:$0xff]
    %v323 = vld [vmem:[#allocation7 + $0x330] sm:$0xff]
    %v324 = vld [vmem:[#allocation7 + $0x338] sm:$0xff]
    %v325 = vld [vmem:[#allocation7 + $0x340] sm:$0xff]
    %v326 = vld [vmem:[#allocation7 + $0x348] sm:$0xff]
    %v327 = vld [vmem:[#allocation7 + $0x350] sm:$0xff]
    %v328 = vld [vmem:[#allocation7 + $0x358] sm:$0xff]
    %v329 = vld [vmem:[#allocation7 + $0x360] sm:$0xff]
    %v330 = vld [vmem:[#allocation7 + $0x368] sm:$0xff]
    %v331 = vld [vmem:[#allocation7 + $0x370] sm:$0xff]
    %v332 = vld [vmem:[#allocation7 + $0x378] sm:$0xff]
    %v333 = vld [vmem:[#allocation7 + $0x380] sm:$0xff]
    %v334 = vld [vmem:[#allocation7 + $0x388] sm:$0xff]
    %v335 = vld [vmem:[#allocation7 + $0x390] sm:$0xff]
    %v336 = vld [vmem:[#allocation7 + $0x398] sm:$0xff]
    %v337 = vld [vmem:[#allocation7 + $0x3a0] sm:$0xff]
    %v338 = vld [vmem:[#allocation7 + $0x3a8] sm:$0xff]
    %v339 = vld [vmem:[#allocation7 + $0x3b0] sm:$0xff]
    %v340 = vld [vmem:[#allocation7 + $0x3b8] sm:$0xff]
    %v341 = vld [vmem:[#allocation7 + $0x3c0] sm:$0xff]
    %v342 = vld [vmem:[#allocation7 + $0x3c8] sm:$0xff]
    %v343 = vld [vmem:[#allocation7 + $0x3d0] sm:$0xff]
    %v344 = vld [vmem:[#allocation7 + $0x3d8] sm:$0xff]
    %v345 = vld [vmem:[#allocation7 + $0x3e0] sm:$0xff]
    %v346 = vld [vmem:[#allocation7 + $0x3e8] sm:$0xff]
    %v347 = vld [vmem:[#allocation7 + $0x3f0] sm:$0xff]
    %v348 = vld [vmem:[#allocation7 + $0x3f8] sm:$0xff]
    %v349 = vld [vmem:[#allocation7 + $0x400] sm:$0xff]
    %v350 = vld [vmem:[#allocation7 + $0x408] sm:$0xff]
    %v351 = vld [vmem:[#allocation7 + $0x410] sm:$0xff]
    %v352 = vld [vmem:[#allocation7 + $0x418] sm:$0xff]
    %v353 = vld [vmem:[#allocation7 + $0x420] sm:$0xff]
    %v354 = vld [vmem:[#allocation7 + $0x428] sm:$0xff]
    %v355 = vld [vmem:[#allocation7 + $0x430] sm:$0xff]
    %v356 = vld [vmem:[#allocation7 + $0x438] sm:$0xff]
    %v357 = vld [vmem:[#allocation7 + $0x440] sm:$0xff]
    %v358 = vld [vmem:[#allocation7 + $0x448] sm:$0xff]
    %v359 = vld [vmem:[#allocation7 + $0x450] sm:$0xff]
    %v360 = vld [vmem:[#allocation7 + $0x458] sm:$0xff]
    %v361 = vld [vmem:[#allocation7 + $0x460] sm:$0xff]
    %v362 = vld [vmem:[#allocation7 + $0x468] sm:$0xff]
    %v363 = vld [vmem:[#allocation7 + $0x470] sm:$0xff]
    %v364 = vld [vmem:[#allocation7 + $0x478] sm:$0xff]
    %v365 = vld [vmem:[#allocation7 + $0x480] sm:$0xff]
    %v366 = vld [vmem:[#allocation7 + $0x488] sm:$0xff]
    %v367 = vld [vmem:[#allocation7 + $0x490] sm:$0xff]
    %v368 = vld [vmem:[#allocation7 + $0x498] sm:$0xff]
    %v369 = vld [vmem:[#allocation7 + $0x4a0] sm:$0xff]
    %v370 = vld [vmem:[#allocation7 + $0x4a8] sm:$0xff]
    %v371 = vld [vmem:[#allocation7 + $0x4b0] sm:$0xff]
    %v372 = vld [vmem:[#allocation7 + $0x4b8] sm:$0xff]
    %v373 = vld [vmem:[#allocation7 + $0x4c0] sm:$0xff]
    %v374 = vld [vmem:[#allocation7 + $0x4c8] sm:$0xff]
    %v375 = vld [vmem:[#allocation7 + $0x4d0] sm:$0xff]
    %v376 = vld [vmem:[#allocation7 + $0x4d8] sm:$0xff]
    %v377 = vld [vmem:[#allocation7 + $0x4e0] sm:$0xff]
    %v378 = vld [vmem:[#allocation7 + $0x4e8] sm:$0xff]
    %v379 = vld [vmem:[#allocation7 + $0x4f0] sm:$0xff]
    %v380 = vld [vmem:[#allocation7 + $0x4f8] sm:$0xff]
    %v381 = vld [vmem:[#allocation7 + $0x500] sm:$0xff]
    %v382 = vld [vmem:[#allocation7 + $0x508] sm:$0xff]
    %v383 = vld [vmem:[#allocation7 + $0x510] sm:$0xff]
    %v384 = vld [vmem:[#allocation7 + $0x518] sm:$0xff]
    %v385 = vld [vmem:[#allocation7 + $0x520] sm:$0xff]
    %v386 = vld [vmem:[#allocation7 + $0x528] sm:$0xff]
    %v387 = vld [vmem:[#allocation7 + $0x530] sm:$0xff]
    %v388 = vld [vmem:[#allocation7 + $0x538] sm:$0xff]
    %v389 = vld [vmem:[#allocation7 + $0x540] sm:$0xff]
    %v390 = vld [vmem:[#allocation7 + $0x548] sm:$0xff]
    %v391 = vld [vmem:[#allocation7 + $0x550] sm:$0xff]
    %v392 = vld [vmem:[#allocation7 + $0x558] sm:$0xff]
    %v393 = vld [vmem:[#allocation7 + $0x560] sm:$0xff]
    %v394 = vld [vmem:[#allocation7 + $0x568] sm:$0xff]
    %v395 = vld [vmem:[#allocation7 + $0x570] sm:$0xff]
    %v396 = vld [vmem:[#allocation7 + $0x578] sm:$0xff]
    %v397 = vld [vmem:[#allocation7 + $0x580] sm:$0xff]
    %v398 = vld [vmem:[#allocation7 + $0x588] sm:$0xff]
    %v399 = vld [vmem:[#allocation7 + $0x590] sm:$0xff]
    %v400 = vld [vmem:[#allocation7 + $0x598] sm:$0xff]
    %v401 = vld [vmem:[#allocation7 + $0x5a0] sm:$0xff]
    %v402 = vld [vmem:[#allocation7 + $0x5a8] sm:$0xff]
    %v403 = vld [vmem:[#allocation7 + $0x5b0] sm:$0xff]
    %v404 = vld [vmem:[#allocation7 + $0x5b8] sm:$0xff]
    %v405 = vld [vmem:[#allocation7 + $0x5c0] sm:$0xff]
    %v406 = vld [vmem:[#allocation7 + $0x5c8] sm:$0xff]
    %v407 = vld [vmem:[#allocation7 + $0x5d0] sm:$0xff]
    %v408 = vld [vmem:[#allocation7 + $0x5d8] sm:$0xff]
    %v409 = vld [vmem:[#allocation7 + $0x5e0] sm:$0xff]
    %v410 = vld [vmem:[#allocation7 + $0x5e8] sm:$0xff]
    %v411 = vld [vmem:[#allocation7 + $0x5f0] sm:$0xff]
    %v412 = vld [vmem:[#allocation7 + $0x5f8] sm:$0xff]
    %v413 = vld [vmem:[#allocation8] sm:$0xff]
    %v414 = vld [vmem:[#allocation8 + $0x8] sm:$0xff]
    %v415 = vld [vmem:[#allocation8 + $0x10] sm:$0xff]
    %v419 = vlaneseq
    %v420 = vshrl.u32 %v419, 7
    %v421 = vsub.s32 0, %v420
    %v422 = vrot.slane %v413, %v421
    %v423 = vlaneseq
    %v424 = vshrl.u32 %v423, 7
    %v425 = vsub.s32 1, %v424
    %v426 = vrot.slane %v413, %v425
    %v427 = vlaneseq
    %v428 = vshrl.u32 %v427, 7
    %v429 = vsub.s32 2, %v428
    %v430 = vrot.slane %v413, %v429
    %v431 = vlaneseq
    %v432 = vshrl.u32 %v431, 7
    %v433 = vsub.s32 3, %v432
    %v434 = vrot.slane %v413, %v433
    %v435 = vlaneseq
    %v436 = vshrl.u32 %v435, 7
    %v437 = vsub.s32 4, %v436
    %v438 = vrot.slane %v413, %v437
    %v439 = vlaneseq
    %v440 = vshrl.u32 %v439, 7
    %v441 = vsub.s32 5, %v440
    %v442 = vrot.slane %v413, %v441
    %v443 = vlaneseq
    %v444 = vshrl.u32 %v443, 7
    %v445 = vsub.s32 6, %v444
    %v446 = vrot.slane %v413, %v445
    %v447 = vlaneseq
    %v448 = vshrl.u32 %v447, 7
    %v449 = vsub.s32 7, %v448
    %v450 = vrot.slane %v413, %v449
    %v451 = vlaneseq
    %v452 = vshrl.u32 %v451, 7
    %v453 = vsub.s32 0, %v452
    %v454 = vrot.slane %v414, %v453
    %v455 = vlaneseq
    %v456 = vshrl.u32 %v455, 7
    %v457 = vsub.s32 1, %v456
    %v458 = vrot.slane %v414, %v457
    %v459 = vlaneseq
    %v460 = vshrl.u32 %v459, 7
    %v461 = vsub.s32 2, %v460
    %v462 = vrot.slane %v414, %v461
    %v463 = vlaneseq
    %v464 = vshrl.u32 %v463, 7
    %v465 = vsub.s32 3, %v464
    %v466 = vrot.slane %v414, %v465
    %v467 = vlaneseq
    %v468 = vshrl.u32 %v467, 7
    %v469 = vsub.s32 4, %v468
    %v470 = vrot.slane %v414, %v469
    %v471 = vlaneseq
    %v472 = vshrl.u32 %v471, 7
    %v473 = vsub.s32 5, %v472
    %v474 = vrot.slane %v414, %v473
    %v475 = vlaneseq
    %v476 = vshrl.u32 %v475, 7
    %v477 = vsub.s32 6, %v476
    %v478 = vrot.slane %v414, %v477
    %v479 = vlaneseq
    %v480 = vshrl.u32 %v479, 7
    %v481 = vsub.s32 7, %v480
    %v482 = vrot.slane %v414, %v481
    %v483 = vlaneseq
    %v484 = vshrl.u32 %v483, 7
    %v485 = vsub.s32 0, %v484
    %v486 = vrot.slane %v415, %v485
    %v487 = vlaneseq
    %v488 = vshrl.u32 %v487, 7
    %v489 = vsub.s32 1, %v488
    %v490 = vrot.slane %v415, %v489
    %v491 = vlaneseq
    %v492 = vshrl.u32 %v491, 7
    %v493 = vsub.s32 2, %v492
    %v494 = vrot.slane %v415, %v493
    %v495 = vlaneseq
    %v496 = vshrl.u32 %v495, 7
    %v497 = vsub.s32 3, %v496
    %v498 = vrot.slane %v415, %v497
    %v499 = vlaneseq
    %v500 = vshrl.u32 %v499, 7
    %v501 = vsub.s32 4, %v500
    %v502 = vrot.slane %v415, %v501
    %v503 = vlaneseq
    %v504 = vshrl.u32 %v503, 7
    %v505 = vsub.s32 5, %v504
    %v506 = vrot.slane %v415, %v505
    %v507 = vlaneseq
    %v508 = vshrl.u32 %v507, 7
    %v509 = vsub.s32 6, %v508
    %v510 = vrot.slane %v415, %v509
    %v511 = vlaneseq
    %v512 = vshrl.u32 %v511, 7
    %v513 = vsub.s32 7, %v512
    %v514 = vrot.slane %v415, %v513
    %v731 = vunpack.c.l.b16 %v221
    %v732 = vunpack.c.h.b16 %v221
    %v733 = vunpack.c.l.b16 %v222
    %v734 = vunpack.c.h.b16 %v222
    %v735 = vunpack.c.l.b16 %v223
    %v736 = vunpack.c.h.b16 %v223
    %v737 = vunpack.c.l.b16 %v224
    %v738 = vunpack.c.h.b16 %v224
    %v739 = vunpack.c.l.b16 %v225
    %v740 = vunpack.c.h.b16 %v225
    %v741 = vunpack.c.l.b16 %v226
    %v742 = vunpack.c.h.b16 %v226
    %v743 = vunpack.c.l.b16 %v227
    %v744 = vunpack.c.h.b16 %v227
    %v745 = vunpack.c.l.b16 %v228
    %v746 = vunpack.c.h.b16 %v228
    %v747 = vunpack.c.l.b16 %v229
    %v748 = vunpack.c.h.b16 %v229
    %v749 = vunpack.c.l.b16 %v230
    %v750 = vunpack.c.h.b16 %v230
    %v751 = vunpack.c.l.b16 %v231
    %v752 = vunpack.c.h.b16 %v231
    %v753 = vunpack.c.l.b16 %v232
    %v754 = vunpack.c.h.b16 %v232
    %v755 = vunpack.c.l.b16 %v233
    %v756 = vunpack.c.h.b16 %v233
    %v757 = vunpack.c.l.b16 %v234
    %v758 = vunpack.c.h.b16 %v234
    %v759 = vunpack.c.l.b16 %v235
    %v760 = vunpack.c.h.b16 %v235
    %v761 = vunpack.c.l.b16 %v236
    %v762 = vunpack.c.h.b16 %v236
    %v763 = vunpack.c.l.b16 %v237
    %v764 = vunpack.c.h.b16 %v237
    %v765 = vunpack.c.l.b16 %v238
    %v766 = vunpack.c.h.b16 %v238
    %v767 = vunpack.c.l.b16 %v239
    %v768 = vunpack.c.h.b16 %v239
    %v769 = vunpack.c.l.b16 %v240
    %v770 = vunpack.c.h.b16 %v240
    %v771 = vunpack.c.l.b16 %v241
    %v772 = vunpack.c.h.b16 %v241
    %v773 = vunpack.c.l.b16 %v242
    %v774 = vunpack.c.h.b16 %v242
    %v775 = vunpack.c.l.b16 %v243
    %v776 = vunpack.c.h.b16 %v243
    %v777 = vunpack.c.l.b16 %v244
    %v778 = vunpack.c.h.b16 %v244
    %v779 = vunpack.c.l.b16 %v245
    %v780 = vunpack.c.h.b16 %v245
    %v781 = vunpack.c.l.b16 %v246
    %v782 = vunpack.c.h.b16 %v246
    %v783 = vunpack.c.l.b16 %v247
    %v784 = vunpack.c.h.b16 %v247
    %v785 = vunpack.c.l.b16 %v248
    %v786 = vunpack.c.h.b16 %v248
    %v787 = vunpack.c.l.b16 %v249
    %v788 = vunpack.c.h.b16 %v249
    %v789 = vunpack.c.l.b16 %v250
    %v790 = vunpack.c.h.b16 %v250
    %v791 = vunpack.c.l.b16 %v251
    %v792 = vunpack.c.h.b16 %v251
    %v793 = vunpack.c.l.b16 %v252
    %v794 = vunpack.c.h.b16 %v252
    %v795 = vunpack.c.l.b16 %v253
    %v796 = vunpack.c.h.b16 %v253
    %v797 = vunpack.c.l.b16 %v254
    %v798 = vunpack.c.h.b16 %v254
    %v799 = vunpack.c.l.b16 %v255
    %v800 = vunpack.c.h.b16 %v255
    %v801 = vunpack.c.l.b16 %v256
    %v802 = vunpack.c.h.b16 %v256
    %v803 = vunpack.c.l.b16 %v257
    %v804 = vunpack.c.h.b16 %v257
    %v805 = vunpack.c.l.b16 %v258
    %v806 = vunpack.c.h.b16 %v258
    %v807 = vunpack.c.l.b16 %v259
    %v808 = vunpack.c.h.b16 %v259
    %v809 = vunpack.c.l.b16 %v260
    %v810 = vunpack.c.h.b16 %v260
    %v811 = vunpack.c.l.b16 %v261
    %v812 = vunpack.c.h.b16 %v261
    %v813 = vunpack.c.l.b16 %v262
    %v814 = vunpack.c.h.b16 %v262
    %v815 = vunpack.c.l.b16 %v263
    %v816 = vunpack.c.h.b16 %v263
    %v817 = vunpack.c.l.b16 %v264
    %v818 = vunpack.c.h.b16 %v264
    %v819 = vunpack.c.l.b16 %v265
    %v820 = vunpack.c.h.b16 %v265
    %v821 = vunpack.c.l.b16 %v266
    %v822 = vunpack.c.h.b16 %v266
    %v823 = vunpack.c.l.b16 %v267
    %v824 = vunpack.c.h.b16 %v267
    %v825 = vunpack.c.l.b16 %v268
    %v826 = vunpack.c.h.b16 %v268
    %v827 = vunpack.c.l.b16 %v269
    %v828 = vunpack.c.h.b16 %v269
    %v829 = vunpack.c.l.b16 %v270
    %v830 = vunpack.c.h.b16 %v270
    %v831 = vunpack.c.l.b16 %v271
    %v832 = vunpack.c.h.b16 %v271
    %v833 = vunpack.c.l.b16 %v272
    %v834 = vunpack.c.h.b16 %v272
    %v835 = vunpack.c.l.b16 %v273
    %v836 = vunpack.c.h.b16 %v273
    %v837 = vunpack.c.l.b16 %v274
    %v838 = vunpack.c.h.b16 %v274
    %v839 = vunpack.c.l.b16 %v275
    %v840 = vunpack.c.h.b16 %v275
    %v841 = vunpack.c.l.b16 %v276
    %v842 = vunpack.c.h.b16 %v276
    %v843 = vunpack.c.l.b16 %v277
    %v844 = vunpack.c.h.b16 %v277
    %v845 = vunpack.c.l.b16 %v278
    %v846 = vunpack.c.h.b16 %v278
    %v847 = vunpack.c.l.b16 %v279
    %v848 = vunpack.c.h.b16 %v279
    %v849 = vunpack.c.l.b16 %v280
    %v850 = vunpack.c.h.b16 %v280
    %v851 = vunpack.c.l.b16 %v281
    %v852 = vunpack.c.h.b16 %v281
    %v853 = vunpack.c.l.b16 %v282
    %v854 = vunpack.c.h.b16 %v282
    %v855 = vunpack.c.l.b16 %v283
    %v856 = vunpack.c.h.b16 %v283
    %v857 = vunpack.c.l.b16 %v284
    %v858 = vunpack.c.h.b16 %v284
    %v859 = vunpack.c.l.b16 %v285
    %v860 = vunpack.c.h.b16 %v285
    %v861 = vunpack.c.l.b16 %v286
    %v862 = vunpack.c.h.b16 %v286
    %v863 = vunpack.c.l.b16 %v287
    %v864 = vunpack.c.h.b16 %v287
    %v865 = vunpack.c.l.b16 %v288
    %v866 = vunpack.c.h.b16 %v288
    %v867 = vunpack.c.l.b16 %v289
    %v868 = vunpack.c.h.b16 %v289
    %v869 = vunpack.c.l.b16 %v290
    %v870 = vunpack.c.h.b16 %v290
    %v871 = vunpack.c.l.b16 %v291
    %v872 = vunpack.c.h.b16 %v291
    %v873 = vunpack.c.l.b16 %v292
    %v874 = vunpack.c.h.b16 %v292
    %v875 = vunpack.c.l.b16 %v293
    %v876 = vunpack.c.h.b16 %v293
    %v877 = vunpack.c.l.b16 %v294
    %v878 = vunpack.c.h.b16 %v294
    %v879 = vunpack.c.l.b16 %v295
    %v880 = vunpack.c.h.b16 %v295
    %v881 = vunpack.c.l.b16 %v296
    %v882 = vunpack.c.h.b16 %v296
    %v883 = vunpack.c.l.b16 %v297
    %v884 = vunpack.c.h.b16 %v297
    %v885 = vunpack.c.l.b16 %v298
    %v886 = vunpack.c.h.b16 %v298
    %v887 = vunpack.c.l.b16 %v299
    %v888 = vunpack.c.h.b16 %v299
    %v889 = vunpack.c.l.b16 %v300
    %v890 = vunpack.c.h.b16 %v300
    %v891 = vunpack.c.l.b16 %v301
    %v892 = vunpack.c.h.b16 %v301
    %v893 = vunpack.c.l.b16 %v302
    %v894 = vunpack.c.h.b16 %v302
    %v895 = vunpack.c.l.b16 %v303
    %v896 = vunpack.c.h.b16 %v303
    %v897 = vunpack.c.l.b16 %v304
    %v898 = vunpack.c.h.b16 %v304
    %v899 = vunpack.c.l.b16 %v305
    %v900 = vunpack.c.h.b16 %v305
    %v901 = vunpack.c.l.b16 %v306
    %v902 = vunpack.c.h.b16 %v306
    %v903 = vunpack.c.l.b16 %v307
    %v904 = vunpack.c.h.b16 %v307
    %v905 = vunpack.c.l.b16 %v308
    %v906 = vunpack.c.h.b16 %v308
    %v907 = vunpack.c.l.b16 %v309
    %v908 = vunpack.c.h.b16 %v309
    %v909 = vunpack.c.l.b16 %v310
    %v910 = vunpack.c.h.b16 %v310
    %v911 = vunpack.c.l.b16 %v311
    %v912 = vunpack.c.h.b16 %v311
    %v913 = vunpack.c.l.b16 %v312
    %v914 = vunpack.c.h.b16 %v312
    %v915 = vunpack.c.l.b16 %v313
    %v916 = vunpack.c.h.b16 %v313
    %v917 = vunpack.c.l.b16 %v314
    %v918 = vunpack.c.h.b16 %v314
    %v919 = vunpack.c.l.b16 %v315
    %v920 = vunpack.c.h.b16 %v315
    %v921 = vunpack.c.l.b16 %v316
    %v922 = vunpack.c.h.b16 %v316
    %v923 = vunpack.c.l.b16 %v317
    %v924 = vunpack.c.h.b16 %v317
    %v925 = vunpack.c.l.b16 %v318
    %v926 = vunpack.c.h.b16 %v318
    %v927 = vunpack.c.l.b16 %v319
    %v928 = vunpack.c.h.b16 %v319
    %v929 = vunpack.c.l.b16 %v320
    %v930 = vunpack.c.h.b16 %v320
    %v931 = vunpack.c.l.b16 %v321
    %v932 = vunpack.c.h.b16 %v321
    %v933 = vunpack.c.l.b16 %v322
    %v934 = vunpack.c.h.b16 %v322
    %v935 = vunpack.c.l.b16 %v323
    %v936 = vunpack.c.h.b16 %v323
    %v937 = vunpack.c.l.b16 %v324
    %v938 = vunpack.c.h.b16 %v324
    %v939 = vunpack.c.l.b16 %v325
    %v940 = vunpack.c.h.b16 %v325
    %v941 = vunpack.c.l.b16 %v326
    %v942 = vunpack.c.h.b16 %v326
    %v943 = vunpack.c.l.b16 %v327
    %v944 = vunpack.c.h.b16 %v327
    %v945 = vunpack.c.l.b16 %v328
    %v946 = vunpack.c.h.b16 %v328
    %v947 = vunpack.c.l.b16 %v329
    %v948 = vunpack.c.h.b16 %v329
    %v949 = vunpack.c.l.b16 %v330
    %v950 = vunpack.c.h.b16 %v330
    %v951 = vunpack.c.l.b16 %v331
    %v952 = vunpack.c.h.b16 %v331
    %v953 = vunpack.c.l.b16 %v332
    %v954 = vunpack.c.h.b16 %v332
    %v955 = vunpack.c.l.b16 %v333
    %v956 = vunpack.c.h.b16 %v333
    %v957 = vunpack.c.l.b16 %v334
    %v958 = vunpack.c.h.b16 %v334
    %v959 = vunpack.c.l.b16 %v335
    %v960 = vunpack.c.h.b16 %v335
    %v961 = vunpack.c.l.b16 %v336
    %v962 = vunpack.c.h.b16 %v336
    %v963 = vunpack.c.l.b16 %v337
    %v964 = vunpack.c.h.b16 %v337
    %v965 = vunpack.c.l.b16 %v338
    %v966 = vunpack.c.h.b16 %v338
    %v967 = vunpack.c.l.b16 %v339
    %v968 = vunpack.c.h.b16 %v339
    %v969 = vunpack.c.l.b16 %v340
    %v970 = vunpack.c.h.b16 %v340
    %v971 = vunpack.c.l.b16 %v341
    %v972 = vunpack.c.h.b16 %v341
    %v973 = vunpack.c.l.b16 %v342
    %v974 = vunpack.c.h.b16 %v342
    %v975 = vunpack.c.l.b16 %v343
    %v976 = vunpack.c.h.b16 %v343
    %v977 = vunpack.c.l.b16 %v344
    %v978 = vunpack.c.h.b16 %v344
    %v979 = vunpack.c.l.b16 %v345
    %v980 = vunpack.c.h.b16 %v345
    %v981 = vunpack.c.l.b16 %v346
    %v982 = vunpack.c.h.b16 %v346
    %v983 = vunpack.c.l.b16 %v347
    %v984 = vunpack.c.h.b16 %v347
    %v985 = vunpack.c.l.b16 %v348
    %v986 = vunpack.c.h.b16 %v348
    %v987 = vunpack.c.l.b16 %v349
    %v988 = vunpack.c.h.b16 %v349
    %v989 = vunpack.c.l.b16 %v350
    %v990 = vunpack.c.h.b16 %v350
    %v991 = vunpack.c.l.b16 %v351
    %v992 = vunpack.c.h.b16 %v351
    %v993 = vunpack.c.l.b16 %v352
    %v994 = vunpack.c.h.b16 %v352
    %v995 = vunpack.c.l.b16 %v353
    %v996 = vunpack.c.h.b16 %v353
    %v997 = vunpack.c.l.b16 %v354
    %v998 = vunpack.c.h.b16 %v354
    %v999 = vunpack.c.l.b16 %v355
    %v1000 = vunpack.c.h.b16 %v355
    %v1001 = vunpack.c.l.b16 %v356
    %v1002 = vunpack.c.h.b16 %v356
    %v1003 = vunpack.c.l.b16 %v357
    %v1004 = vunpack.c.h.b16 %v357
    %v1005 = vunpack.c.l.b16 %v358
    %v1006 = vunpack.c.h.b16 %v358
    %v1007 = vunpack.c.l.b16 %v359
    %v1008 = vunpack.c.h.b16 %v359
    %v1009 = vunpack.c.l.b16 %v360
    %v1010 = vunpack.c.h.b16 %v360
    %v1011 = vunpack.c.l.b16 %v361
    %v1012 = vunpack.c.h.b16 %v361
    %v1013 = vunpack.c.l.b16 %v362
    %v1014 = vunpack.c.h.b16 %v362
    %v1015 = vunpack.c.l.b16 %v363
    %v1016 = vunpack.c.h.b16 %v363
    %v1017 = vunpack.c.l.b16 %v364
    %v1018 = vunpack.c.h.b16 %v364
    %v1019 = vunpack.c.l.b16 %v365
    %v1020 = vunpack.c.h.b16 %v365
    %v1021 = vunpack.c.l.b16 %v366
    %v1022 = vunpack.c.h.b16 %v366
    %v1023 = vunpack.c.l.b16 %v367
    %v1024 = vunpack.c.h.b16 %v367
    %v1025 = vunpack.c.l.b16 %v368
    %v1026 = vunpack.c.h.b16 %v368
    %v1027 = vunpack.c.l.b16 %v369
    %v1028 = vunpack.c.h.b16 %v369
    %v1029 = vunpack.c.l.b16 %v370
    %v1030 = vunpack.c.h.b16 %v370
    %v1031 = vunpack.c.l.b16 %v371
    %v1032 = vunpack.c.h.b16 %v371
    %v1033 = vunpack.c.l.b16 %v372
    %v1034 = vunpack.c.h.b16 %v372
    %v1035 = vunpack.c.l.b16 %v373
    %v1036 = vunpack.c.h.b16 %v373
    %v1037 = vunpack.c.l.b16 %v374
    %v1038 = vunpack.c.h.b16 %v374
    %v1039 = vunpack.c.l.b16 %v375
    %v1040 = vunpack.c.h.b16 %v375
    %v1041 = vunpack.c.l.b16 %v376
    %v1042 = vunpack.c.h.b16 %v376
    %v1043 = vunpack.c.l.b16 %v377
    %v1044 = vunpack.c.h.b16 %v377
    %v1045 = vunpack.c.l.b16 %v378
    %v1046 = vunpack.c.h.b16 %v378
    %v1047 = vunpack.c.l.b16 %v379
    %v1048 = vunpack.c.h.b16 %v379
    %v1049 = vunpack.c.l.b16 %v380
    %v1050 = vunpack.c.h.b16 %v380
    %v1051 = vunpack.c.l.b16 %v381
    %v1052 = vunpack.c.h.b16 %v381
    %v1053 = vunpack.c.l.b16 %v382
    %v1054 = vunpack.c.h.b16 %v382
    %v1055 = vunpack.c.l.b16 %v383
    %v1056 = vunpack.c.h.b16 %v383
    %v1057 = vunpack.c.l.b16 %v384
    %v1058 = vunpack.c.h.b16 %v384
    %v1059 = vunpack.c.l.b16 %v385
    %v1060 = vunpack.c.h.b16 %v385
    %v1061 = vunpack.c.l.b16 %v386
    %v1062 = vunpack.c.h.b16 %v386
    %v1063 = vunpack.c.l.b16 %v387
    %v1064 = vunpack.c.h.b16 %v387
    %v1065 = vunpack.c.l.b16 %v388
    %v1066 = vunpack.c.h.b16 %v388
    %v1067 = vunpack.c.l.b16 %v389
    %v1068 = vunpack.c.h.b16 %v389
    %v1069 = vunpack.c.l.b16 %v390
    %v1070 = vunpack.c.h.b16 %v390
    %v1071 = vunpack.c.l.b16 %v391
    %v1072 = vunpack.c.h.b16 %v391
    %v1073 = vunpack.c.l.b16 %v392
    %v1074 = vunpack.c.h.b16 %v392
    %v1075 = vunpack.c.l.b16 %v393
    %v1076 = vunpack.c.h.b16 %v393
    %v1077 = vunpack.c.l.b16 %v394
    %v1078 = vunpack.c.h.b16 %v394
    %v1079 = vunpack.c.l.b16 %v395
    %v1080 = vunpack.c.h.b16 %v395
    %v1081 = vunpack.c.l.b16 %v396
    %v1082 = vunpack.c.h.b16 %v396
    %v1083 = vunpack.c.l.b16 %v397
    %v1084 = vunpack.c.h.b16 %v397
    %v1085 = vunpack.c.l.b16 %v398
    %v1086 = vunpack.c.h.b16 %v398
    %v1087 = vunpack.c.l.b16 %v399
    %v1088 = vunpack.c.h.b16 %v399
    %v1089 = vunpack.c.l.b16 %v400
    %v1090 = vunpack.c.h.b16 %v400
    %v1091 = vunpack.c.l.b16 %v401
    %v1092 = vunpack.c.h.b16 %v401
    %v1093 = vunpack.c.l.b16 %v402
    %v1094 = vunpack.c.h.b16 %v402
    %v1095 = vunpack.c.l.b16 %v403
    %v1096 = vunpack.c.h.b16 %v403
    %v1097 = vunpack.c.l.b16 %v404
    %v1098 = vunpack.c.h.b16 %v404
    %v1099 = vunpack.c.l.b16 %v405
    %v1100 = vunpack.c.h.b16 %v405
    %v1101 = vunpack.c.l.b16 %v406
    %v1102 = vunpack.c.h.b16 %v406
    %v1103 = vunpack.c.l.b16 %v407
    %v1104 = vunpack.c.h.b16 %v407
    %v1105 = vunpack.c.l.b16 %v408
    %v1106 = vunpack.c.h.b16 %v408
    %v1107 = vunpack.c.l.b16 %v409
    %v1108 = vunpack.c.h.b16 %v409
    %v1109 = vunpack.c.l.b16 %v410
    %v1110 = vunpack.c.h.b16 %v410
    %v1111 = vunpack.c.l.b16 %v411
    %v1112 = vunpack.c.h.b16 %v411
    %v1113 = vunpack.c.l.b16 %v412
    %v1114 = vunpack.c.h.b16 %v412
    %v1115 = vpack.c.b16 %v755, %v731
    %v1116 = vpack.c.b16 %v756, %v732
    %v1117 = vpack.c.b16 %v757, %v733
    %v1118 = vpack.c.b16 %v758, %v734
    %v1119 = vpack.c.b16 %v759, %v735
    %v1120 = vpack.c.b16 %v760, %v736
    %v1121 = vpack.c.b16 %v761, %v737
    %v1122 = vpack.c.b16 %v762, %v738
    %v1123 = vpack.c.b16 %v763, %v739
    %v1124 = vpack.c.b16 %v764, %v740
    %v1125 = vpack.c.b16 %v765, %v741
    %v1126 = vpack.c.b16 %v766, %v742
    %v1127 = vpack.c.b16 %v767, %v743
    %v1128 = vpack.c.b16 %v768, %v744
    %v1129 = vpack.c.b16 %v769, %v745
    %v1130 = vpack.c.b16 %v770, %v746
    %v1131 = vpack.c.b16 %v771, %v747
    %v1132 = vpack.c.b16 %v772, %v748
    %v1133 = vpack.c.b16 %v773, %v749
    %v1134 = vpack.c.b16 %v774, %v750
    %v1135 = vpack.c.b16 %v775, %v751
    %v1136 = vpack.c.b16 %v776, %v752
    %v1137 = vpack.c.b16 %v777, %v753
    %v1138 = vpack.c.b16 %v778, %v754
    %v1139 = vpack.c.b16 %v803, %v779
    %v1140 = vpack.c.b16 %v804, %v780
    %v1141 = vpack.c.b16 %v805, %v781
    %v1142 = vpack.c.b16 %v806, %v782
    %v1143 = vpack.c.b16 %v807, %v783
    %v1144 = vpack.c.b16 %v808, %v784
    %v1145 = vpack.c.b16 %v809, %v785
    %v1146 = vpack.c.b16 %v810, %v786
    %v1147 = vpack.c.b16 %v811, %v787
    %v1148 = vpack.c.b16 %v812, %v788
    %v1149 = vpack.c.b16 %v813, %v789
    %v1150 = vpack.c.b16 %v814, %v790
    %v1151 = vpack.c.b16 %v815, %v791
    %v1152 = vpack.c.b16 %v816, %v792
    %v1153 = vpack.c.b16 %v817, %v793
    %v1154 = vpack.c.b16 %v818, %v794
    %v1155 = vpack.c.b16 %v819, %v795
    %v1156 = vpack.c.b16 %v820, %v796
    %v1157 = vpack.c.b16 %v821, %v797
    %v1158 = vpack.c.b16 %v822, %v798
    %v1159 = vpack.c.b16 %v823, %v799
    %v1160 = vpack.c.b16 %v824, %v800
    %v1161 = vpack.c.b16 %v825, %v801
    %v1162 = vpack.c.b16 %v826, %v802
    %v1163 = vpack.c.b16 %v851, %v827
    %v1164 = vpack.c.b16 %v852, %v828
    %v1165 = vpack.c.b16 %v853, %v829
    %v1166 = vpack.c.b16 %v854, %v830
    %v1167 = vpack.c.b16 %v855, %v831
    %v1168 = vpack.c.b16 %v856, %v832
    %v1169 = vpack.c.b16 %v857, %v833
    %v1170 = vpack.c.b16 %v858, %v834
    %v1171 = vpack.c.b16 %v859, %v835
    %v1172 = vpack.c.b16 %v860, %v836
    %v1173 = vpack.c.b16 %v861, %v837
    %v1174 = vpack.c.b16 %v862, %v838
    %v1175 = vpack.c.b16 %v863, %v839
    %v1176 = vpack.c.b16 %v864, %v840
    %v1177 = vpack.c.b16 %v865, %v841
    %v1178 = vpack.c.b16 %v866, %v842
    %v1179 = vpack.c.b16 %v867, %v843
    %v1180 = vpack.c.b16 %v868, %v844
    %v1181 = vpack.c.b16 %v869, %v845
    %v1182 = vpack.c.b16 %v870, %v846
    %v1183 = vpack.c.b16 %v871, %v847
    %v1184 = vpack.c.b16 %v872, %v848
    %v1185 = vpack.c.b16 %v873, %v849
    %v1186 = vpack.c.b16 %v874, %v850
    %v1187 = vpack.c.b16 %v899, %v875
    %v1188 = vpack.c.b16 %v900, %v876
    %v1189 = vpack.c.b16 %v901, %v877
    %v1190 = vpack.c.b16 %v902, %v878
    %v1191 = vpack.c.b16 %v903, %v879
    %v1192 = vpack.c.b16 %v904, %v880
    %v1193 = vpack.c.b16 %v905, %v881
    %v1194 = vpack.c.b16 %v906, %v882
    %v1195 = vpack.c.b16 %v907, %v883
    %v1196 = vpack.c.b16 %v908, %v884
    %v1197 = vpack.c.b16 %v909, %v885
    %v1198 = vpack.c.b16 %v910, %v886
    %v1199 = vpack.c.b16 %v911, %v887
    %v1200 = vpack.c.b16 %v912, %v888
    %v1201 = vpack.c.b16 %v913, %v889
    %v1202 = vpack.c.b16 %v914, %v890
    %v1203 = vpack.c.b16 %v915, %v891
    %v1204 = vpack.c.b16 %v916, %v892
    %v1205 = vpack.c.b16 %v917, %v893
    %v1206 = vpack.c.b16 %v918, %v894
    %v1207 = vpack.c.b16 %v919, %v895
    %v1208 = vpack.c.b16 %v920, %v896
    %v1209 = vpack.c.b16 %v921, %v897
    %v1210 = vpack.c.b16 %v922, %v898
    %v1211 = vpack.c.b16 %v947, %v923
    %v1212 = vpack.c.b16 %v948, %v924
    %v1213 = vpack.c.b16 %v949, %v925
    %v1214 = vpack.c.b16 %v950, %v926
    %v1215 = vpack.c.b16 %v951, %v927
    %v1216 = vpack.c.b16 %v952, %v928
    %v1217 = vpack.c.b16 %v953, %v929
    %v1218 = vpack.c.b16 %v954, %v930
    %v1219 = vpack.c.b16 %v955, %v931
    %v1220 = vpack.c.b16 %v956, %v932
    %v1221 = vpack.c.b16 %v957, %v933
    %v1222 = vpack.c.b16 %v958, %v934
    %v1223 = vpack.c.b16 %v959, %v935
    %v1224 = vpack.c.b16 %v960, %v936
    %v1225 = vpack.c.b16 %v961, %v937
    %v1226 = vpack.c.b16 %v962, %v938
    %v1227 = vpack.c.b16 %v963, %v939
    %v1228 = vpack.c.b16 %v964, %v940
    %v1229 = vpack.c.b16 %v965, %v941
    %v1230 = vpack.c.b16 %v966, %v942
    %v1231 = vpack.c.b16 %v967, %v943
    %v1232 = vpack.c.b16 %v968, %v944
    %v1233 = vpack.c.b16 %v969, %v945
    %v1234 = vpack.c.b16 %v970, %v946
    %v1235 = vpack.c.b16 %v995, %v971
    %v1236 = vpack.c.b16 %v996, %v972
    %v1237 = vpack.c.b16 %v997, %v973
    %v1238 = vpack.c.b16 %v998, %v974
    %v1239 = vpack.c.b16 %v999, %v975
    %v1240 = vpack.c.b16 %v1000, %v976
    %v1241 = vpack.c.b16 %v1001, %v977
    %v1242 = vpack.c.b16 %v1002, %v978
    %v1243 = vpack.c.b16 %v1003, %v979
    %v1244 = vpack.c.b16 %v1004, %v980
    %v1245 = vpack.c.b16 %v1005, %v981
    %v1246 = vpack.c.b16 %v1006, %v982
    %v1247 = vpack.c.b16 %v1007, %v983
    %v1248 = vpack.c.b16 %v1008, %v984
    %v1249 = vpack.c.b16 %v1009, %v985
    %v1250 = vpack.c.b16 %v1010, %v986
    %v1251 = vpack.c.b16 %v1011, %v987
    %v1252 = vpack.c.b16 %v1012, %v988
    %v1253 = vpack.c.b16 %v1013, %v989
    %v1254 = vpack.c.b16 %v1014, %v990
    %v1255 = vpack.c.b16 %v1015, %v991
    %v1256 = vpack.c.b16 %v1016, %v992
    %v1257 = vpack.c.b16 %v1017, %v993
    %v1258 = vpack.c.b16 %v1018, %v994
    %v1259 = vpack.c.b16 %v1043, %v1019
    %v1260 = vpack.c.b16 %v1044, %v1020
    %v1261 = vpack.c.b16 %v1045, %v1021
    %v1262 = vpack.c.b16 %v1046, %v1022
    %v1263 = vpack.c.b16 %v1047, %v1023
    %v1264 = vpack.c.b16 %v1048, %v1024
    %v1265 = vpack.c.b16 %v1049, %v1025
    %v1266 = vpack.c.b16 %v1050, %v1026
    %v1267 = vpack.c.b16 %v1051, %v1027
    %v1268 = vpack.c.b16 %v1052, %v1028
    %v1269 = vpack.c.b16 %v1053, %v1029
    %v1270 = vpack.c.b16 %v1054, %v1030
    %v1271 = vpack.c.b16 %v1055, %v1031
    %v1272 = vpack.c.b16 %v1056, %v1032
    %v1273 = vpack.c.b16 %v1057, %v1033
    %v1274 = vpack.c.b16 %v1058, %v1034
    %v1275 = vpack.c.b16 %v1059, %v1035
    %v1276 = vpack.c.b16 %v1060, %v1036
    %v1277 = vpack.c.b16 %v1061, %v1037
    %v1278 = vpack.c.b16 %v1062, %v1038
    %v1279 = vpack.c.b16 %v1063, %v1039
    %v1280 = vpack.c.b16 %v1064, %v1040
    %v1281 = vpack.c.b16 %v1065, %v1041
    %v1282 = vpack.c.b16 %v1066, %v1042
    %v1283 = vpack.c.b16 %v1091, %v1067
    %v1284 = vpack.c.b16 %v1092, %v1068
    %v1285 = vpack.c.b16 %v1093, %v1069
    %v1286 = vpack.c.b16 %v1094, %v1070
    %v1287 = vpack.c.b16 %v1095, %v1071
    %v1288 = vpack.c.b16 %v1096, %v1072
    %v1289 = vpack.c.b16 %v1097, %v1073
    %v1290 = vpack.c.b16 %v1098, %v1074
    %v1291 = vpack.c.b16 %v1099, %v1075
    %v1292 = vpack.c.b16 %v1100, %v1076
    %v1293 = vpack.c.b16 %v1101, %v1077
    %v1294 = vpack.c.b16 %v1102, %v1078
    %v1295 = vpack.c.b16 %v1103, %v1079
    %v1296 = vpack.c.b16 %v1104, %v1080
    %v1297 = vpack.c.b16 %v1105, %v1081
    %v1298 = vpack.c.b16 %v1106, %v1082
    %v1299 = vpack.c.b16 %v1107, %v1083
    %v1300 = vpack.c.b16 %v1108, %v1084
    %v1301 = vpack.c.b16 %v1109, %v1085
    %v1302 = vpack.c.b16 %v1110, %v1086
    %v1303 = vpack.c.b16 %v1111, %v1087
    %v1304 = vpack.c.b16 %v1112, %v1088
    %v1305 = vpack.c.b16 %v1113, %v1089
    %v1306 = vpack.c.b16 %v1114, %v1090
    %1499 = vmatprep.subr.bf16.mxu0 %v1116
    %1500 = vmatpush1.bf16.msra.mxu0 %v1115
    %1501 = vmatprep.subr.bf16.mxu0 %v1140
    %1502 = vmatpush1.bf16.msra.mxu0 %v1139
    %1503 = vmatprep.subr.bf16.mxu0 %v1164
    %1504 = vmatpush1.bf16.msra.mxu0 %v1163
    %1505 = vmatprep.subr.bf16.mxu0 %v1188
    %1506 = vmatpush1.bf16.msra.mxu0 %v1187
    %1507 = vmatprep.subr.bf16.mxu0 %v1212
    %1508 = vmatpush1.bf16.msra.mxu0 %v1211
    %1509 = vmatprep.subr.bf16.mxu0 %v1236
    %1510 = vmatpush1.bf16.msra.mxu0 %v1235
    %1511 = vmatprep.subr.bf16.mxu0 %v1260
    %1512 = vmatpush1.bf16.msra.mxu0 %v1259
    %1513 = vmatprep.subr.bf16.mxu0 %v1284
    %1514 = vmatpush1.bf16.msra.mxu0 %v1283
    %1515 = vmatprep.subr.bf16.mxu0 0
    %1516 = vmatpush1.bf16.msra.mxu0 0
    %1517 = vmatprep.subr.bf16.mxu0 0
    %1518 = vmatpush1.bf16.msra.mxu0 0
    %1519 = vmatprep.subr.bf16.mxu0 0
    %1520 = vmatpush1.bf16.msra.mxu0 0
    %1521 = vmatprep.subr.bf16.mxu0 0
    %1522 = vmatpush1.bf16.msra.mxu0 0
    %1523 = vmatprep.subr.bf16.mxu0 0
    %1524 = vmatpush1.bf16.msra.mxu0 0
    %1525 = vmatprep.subr.bf16.mxu0 0
    %1526 = vmatpush1.bf16.msra.mxu0 0
    %1527 = vmatprep.subr.bf16.mxu0 0
    %1528 = vmatpush1.bf16.msra.mxu0 0
    %1529 = vmatprep.subr.bf16.mxu0 0
    %1530 = vmatpush1.bf16.msra.mxu0 0
    %1531 = vmatprep.mubr.bf16.mxu0 0
    %1532 = vmatmul.mubr.bf16.gmra.mrb[0].mxu0 %v220
    %v1533 = vpop.f32.mrb[0].mxu0
    %v1534 = vadd.f32 %v422, %v1533
    %v1535 = vpop.f32.mrb[0].mxu0
    %v1536 = vadd.f32 %v426, %v1535
    %v1537 = vpop.f32.mrb[0].mxu0
    %v1538 = vadd.f32 %v422, %v1537
    %v1539 = vpop.f32.mrb[0].mxu0
    %v1540 = vadd.f32 %v426, %v1539
    %1541 = vdwg.mxu0
    %1542 = vmatprep.subr.bf16.mxu0 %v1118
    %1543 = vmatpush1.bf16.msra.mxu0 %v1117
    %1544 = vmatprep.subr.bf16.mxu0 %v1142
    %1545 = vmatpush1.bf16.msra.mxu0 %v1141
    %1546 = vmatprep.subr.bf16.mxu0 %v1166
    %1547 = vmatpush1.bf16.msra.mxu0 %v1165
    %1548 = vmatprep.subr.bf16.mxu0 %v1190
    %1549 = vmatpush1.bf16.msra.mxu0 %v1189
    %1550 = vmatprep.subr.bf16.mxu0 %v1214
    %1551 = vmatpush1.bf16.msra.mxu0 %v1213
    %1552 = vmatprep.subr.bf16.mxu0 %v1238
    %1553 = vmatpush1.bf16.msra.mxu0 %v1237
    %1554 = vmatprep.subr.bf16.mxu0 %v1262
    %1555 = vmatpush1.bf16.msra.mxu0 %v1261
    %1556 = vmatprep.subr.bf16.mxu0 %v1286
    %1557 = vmatpush1.bf16.msra.mxu0 %v1285
    %1558 = vmatprep.subr.bf16.mxu0 0
    %1559 = vmatpush1.bf16.msra.mxu0 0
    %1560 = vmatprep.subr.bf16.mxu0 0
    %1561 = vmatpush1.bf16.msra.mxu0 0
    %1562 = vmatprep.subr.bf16.mxu0 0
    %1563 = vmatpush1.bf16.msra.mxu0 0
    %1564 = vmatprep.subr.bf16.mxu0 0
    %1565 = vmatpush1.bf16.msra.mxu0 0
    %1566 = vmatprep.subr.bf16.mxu0 0
    %1567 = vmatpush1.bf16.msra.mxu0 0
    %1568 = vmatprep.subr.bf16.mxu0 0
    %1569 = vmatpush1.bf16.msra.mxu0 0
    %1570 = vmatprep.subr.bf16.mxu0 0
    %1571 = vmatpush1.bf16.msra.mxu0 0
    %1572 = vmatprep.subr.bf16.mxu0 0
    %1573 = vmatpush1.bf16.msra.mxu0 0
    %1574 = vmatprep.mubr.bf16.mxu0 0
    %1575 = vmatmul.mubr.bf16.gmra.mrb[0].mxu0 %v220
    %v1576 = vpop.f32.mrb[0].mxu0
    %v1577 = vadd.f32 %v430, %v1576
    %v1578 = vpop.f32.mrb[0].mxu0
    %v1579 = vadd.f32 %v434, %v1578
    %v1580 = vpop.f32.mrb[0].mxu0
    %v1581 = vadd.f32 %v430, %v1580
    %v1582 = vpop.f32.mrb[0].mxu0
    %v1583 = vadd.f32 %v434, %v1582
    %1584 = vdwg.mxu0
    %1585 = vmatprep.subr.bf16.mxu0 %v1120
    %1586 = vmatpush1.bf16.msra.mxu0 %v1119
    %1587 = vmatprep.subr.bf16.mxu0 %v1144
    %1588 = vmatpush1.bf16.msra.mxu0 %v1143
    %1589 = vmatprep.subr.bf16.mxu0 %v1168
    %1590 = vmatpush1.bf16.msra.mxu0 %v1167
    %1591 = vmatprep.subr.bf16.mxu0 %v1192
    %1592 = vmatpush1.bf16.msra.mxu0 %v1191
    %1593 = vmatprep.subr.bf16.mxu0 %v1216
    %1594 = vmatpush1.bf16.msra.mxu0 %v1215
    %1595 = vmatprep.subr.bf16.mxu0 %v1240
    %1596 = vmatpush1.bf16.msra.mxu0 %v1239
    %1597 = vmatprep.subr.bf16.mxu0 %v1264
    %1598 = vmatpush1.bf16.msra.mxu0 %v1263
    %1599 = vmatprep.subr.bf16.mxu0 %v1288
    %1600 = vmatpush1.bf16.msra.mxu0 %v1287
    %1601 = vmatprep.subr.bf16.mxu0 0
    %1602 = vmatpush1.bf16.msra.mxu0 0
    %1603 = vmatprep.subr.bf16.mxu0 0
    %1604 = vmatpush1.bf16.msra.mxu0 0
    %1605 = vmatprep.subr.bf16.mxu0 0
    %1606 = vmatpush1.bf16.msra.mxu0 0
    %1607 = vmatprep.subr.bf16.mxu0 0
    %1608 = vmatpush1.bf16.msra.mxu0 0
    %1609 = vmatprep.subr.bf16.mxu0 0
    %1610 = vmatpush1.bf16.msra.mxu0 0
    %1611 = vmatprep.subr.bf16.mxu0 0
    %1612 = vmatpush1.bf16.msra.mxu0 0
    %1613 = vmatprep.subr.bf16.mxu0 0
    %1614 = vmatpush1.bf16.msra.mxu0 0
    %1615 = vmatprep.subr.bf16.mxu0 0
    %1616 = vmatpush1.bf16.msra.mxu0 0
    %1617 = vmatprep.mubr.bf16.mxu0 0
    %1618 = vmatmul.mubr.bf16.gmra.mrb[0].mxu0 %v220
    %v1619 = vpop.f32.mrb[0].mxu0
    %v1620 = vadd.f32 %v438, %v1619
    %v1621 = vpop.f32.mrb[0].mxu0
    %v1622 = vadd.f32 %v442, %v1621
    %v1623 = vpop.f32.mrb[0].mxu0
    %v1624 = vadd.f32 %v438, %v1623
    %v1625 = vpop.f32.mrb[0].mxu0
    %v1626 = vadd.f32 %v442, %v1625
    %1627 = vdwg.mxu0
    %1628 = vmatprep.subr.bf16.mxu0 %v1122
    %1629 = vmatpush1.bf16.msra.mxu0 %v1121
    %1630 = vmatprep.subr.bf16.mxu0 %v1146
    %1631 = vmatpush1.bf16.msra.mxu0 %v1145
    %1632 = vmatprep.subr.bf16.mxu0 %v1170
    %1633 = vmatpush1.bf16.msra.mxu0 %v1169
    %1634 = vmatprep.subr.bf16.mxu0 %v1194
    %1635 = vmatpush1.bf16.msra.mxu0 %v1193
    %1636 = vmatprep.subr.bf16.mxu0 %v1218
    %1637 = vmatpush1.bf16.msra.mxu0 %v1217
    %1638 = vmatprep.subr.bf16.mxu0 %v1242
    %1639 = vmatpush1.bf16.msra.mxu0 %v1241
    %1640 = vmatprep.subr.bf16.mxu0 %v1266
    %1641 = vmatpush1.bf16.msra.mxu0 %v1265
    %1642 = vmatprep.subr.bf16.mxu0 %v1290
    %1643 = vmatpush1.bf16.msra.mxu0 %v1289
    %1644 = vmatprep.subr.bf16.mxu0 0
    %1645 = vmatpush1.bf16.msra.mxu0 0
    %1646 = vmatprep.subr.bf16.mxu0 0
    %1647 = vmatpush1.bf16.msra.mxu0 0
    %1648 = vmatprep.subr.bf16.mxu0 0
    %1649 = vmatpush1.bf16.msra.mxu0 0
    %1650 = vmatprep.subr.bf16.mxu0 0
    %1651 = vmatpush1.bf16.msra.mxu0 0
    %1652 = vmatprep.subr.bf16.mxu0 0
    %1653 = vmatpush1.bf16.msra.mxu0 0
    %1654 = vmatprep.subr.bf16.mxu0 0
    %1655 = vmatpush1.bf16.msra.mxu0 0
    %1656 = vmatprep.subr.bf16.mxu0 0
    %1657 = vmatpush1.bf16.msra.mxu0 0
    %1658 = vmatprep.subr.bf16.mxu0 0
    %1659 = vmatpush1.bf16.msra.mxu0 0
    %1660 = vmatprep.mubr.bf16.mxu0 0
    %1661 = vmatmul.mubr.bf16.gmra.mrb[0].mxu0 %v220
    %v1662 = vpop.f32.mrb[0].mxu0
    %v1663 = vadd.f32 %v446, %v1662
    %v1664 = vpop.f32.mrb[0].mxu0
    %v1665 = vadd.f32 %v450, %v1664
    %v1666 = vpop.f32.mrb[0].mxu0
    %v1667 = vadd.f32 %v446, %v1666
    %v1668 = vpop.f32.mrb[0].mxu0
    %v1669 = vadd.f32 %v450, %v1668
    %1670 = vdwg.mxu0
    %1671 = vmatprep.subr.bf16.mxu0 %v1124
    %1672 = vmatpush1.bf16.msra.mxu0 %v1123
    %1673 = vmatprep.subr.bf16.mxu0 %v1148
    %1674 = vmatpush1.bf16.msra.mxu0 %v1147
    %1675 = vmatprep.subr.bf16.mxu0 %v1172
    %1676 = vmatpush1.bf16.msra.mxu0 %v1171
    %1677 = vmatprep.subr.bf16.mxu0 %v1196
    %1678 = vmatpush1.bf16.msra.mxu0 %v1195
    %1679 = vmatprep.subr.bf16.mxu0 %v1220
    %1680 = vmatpush1.bf16.msra.mxu0 %v1219
    %1681 = vmatprep.subr.bf16.mxu0 %v1244
    %1682 = vmatpush1.bf16.msra.mxu0 %v1243
    %1683 = vmatprep.subr.bf16.mxu0 %v1268
    %1684 = vmatpush1.bf16.msra.mxu0 %v1267
    %1685 = vmatprep.subr.bf16.mxu0 %v1292
    %1686 = vmatpush1.bf16.msra.mxu0 %v1291
    %1687 = vmatprep.subr.bf16.mxu0 0
    %1688 = vmatpush1.bf16.msra.mxu0 0
    %1689 = vmatprep.subr.bf16.mxu0 0
    %1690 = vmatpush1.bf16.msra.mxu0 0
    %1691 = vmatprep.subr.bf16.mxu0 0
    %1692 = vmatpush1.bf16.msra.mxu0 0
    %1693 = vmatprep.subr.bf16.mxu0 0
    %1694 = vmatpush1.bf16.msra.mxu0 0
    %1695 = vmatprep.subr.bf16.mxu0 0
    %1696 = vmatpush1.bf16.msra.mxu0 0
    %1697 = vmatprep.subr.bf16.mxu0 0
    %1698 = vmatpush1.bf16.msra.mxu0 0
    %1699 = vmatprep.subr.bf16.mxu0 0
    %1700 = vmatpush1.bf16.msra.mxu0 0
    %1701 = vmatprep.subr.bf16.mxu0 0
    %1702 = vmatpush1.bf16.msra.mxu0 0
    %1703 = vmatprep.mubr.bf16.mxu0 0
    %1704 = vmatmul.mubr.bf16.gmra.mrb[0].mxu0 %v220
    %v1705 = vpop.f32.mrb[0].mxu0
    %v1706 = vadd.f32 %v454, %v1705
    %v1707 = vpop.f32.mrb[0].mxu0
    %v1708 = vadd.f32 %v458, %v1707
    %v1709 = vpop.f32.mrb[0].mxu0
    %v1710 = vadd.f32 %v454, %v1709
    %v1711 = vpop.f32.mrb[0].mxu0
    %v1712 = vadd.f32 %v458, %v1711
    %1713 = vdwg.mxu0
    %1714 = vmatprep.subr.bf16.mxu0 %v1126
    %1715 = vmatpush1.bf16.msra.mxu0 %v1125
    %1716 = vmatprep.subr.bf16.mxu0 %v1150
    %1717 = vmatpush1.bf16.msra.mxu0 %v1149
    %1718 = vmatprep.subr.bf16.mxu0 %v1174
    %1719 = vmatpush1.bf16.msra.mxu0 %v1173
    %1720 = vmatprep.subr.bf16.mxu0 %v1198
    %1721 = vmatpush1.bf16.msra.mxu0 %v1197
    %1722 = vmatprep.subr.bf16.mxu0 %v1222
    %1723 = vmatpush1.bf16.msra.mxu0 %v1221
    %1724 = vmatprep.subr.bf16.mxu0 %v1246
    %1725 = vmatpush1.bf16.msra.mxu0 %v1245
    %1726 = vmatprep.subr.bf16.mxu0 %v1270
    %1727 = vmatpush1.bf16.msra.mxu0 %v1269
    %1728 = vmatprep.subr.bf16.mxu0 %v1294
    %1729 = vmatpush1.bf16.msra.mxu0 %v1293
    %1730 = vmatprep.subr.bf16.mxu0 0
    %1731 = vmatpush1.bf16.msra.mxu0 0
    %1732 = vmatprep.subr.bf16.mxu0 0
    %1733 = vmatpush1.bf16.msra.mxu0 0
    %1734 = vmatprep.subr.bf16.mxu0 0
    %1735 = vmatpush1.bf16.msra.mxu0 0
    %1736 = vmatprep.subr.bf16.mxu0 0
    %1737 = vmatpush1.bf16.msra.mxu0 0
    %1738 = vmatprep.subr.bf16.mxu0 0
    %1739 = vmatpush1.bf16.msra.mxu0 0
    %1740 = vmatprep.subr.bf16.mxu0 0
    %1741 = vmatpush1.bf16.msra.mxu0 0
    %1742 = vmatprep.subr.bf16.mxu0 0
    %1743 = vmatpush1.bf16.msra.mxu0 0
    %1744 = vmatprep.subr.bf16.mxu0 0
    %1745 = vmatpush1.bf16.msra.mxu0 0
    %1746 = vmatprep.mubr.bf16.mxu0 0
    %1747 = vmatmul.mubr.bf16.gmra.mrb[0].mxu0 %v220
    %v1748 = vpop.f32.mrb[0].mxu0
    %v1749 = vadd.f32 %v462, %v1748
    %v1750 = vpop.f32.mrb[0].mxu0
    %v1751 = vadd.f32 %v466, %v1750
    %v1752 = vpop.f32.mrb[0].mxu0
    %v1753 = vadd.f32 %v462, %v1752
    %v1754 = vpop.f32.mrb[0].mxu0
    %v1755 = vadd.f32 %v466, %v1754
    %1756 = vdwg.mxu0
    %1757 = vmatprep.subr.bf16.mxu0 %v1128
    %1758 = vmatpush1.bf16.msra.mxu0 %v1127
    %1759 = vmatprep.subr.bf16.mxu0 %v1152
    %1760 = vmatpush1.bf16.msra.mxu0 %v1151
    %1761 = vmatprep.subr.bf16.mxu0 %v1176
    %1762 = vmatpush1.bf16.msra.mxu0 %v1175
    %1763 = vmatprep.subr.bf16.mxu0 %v1200
    %1764 = vmatpush1.bf16.msra.mxu0 %v1199
    %1765 = vmatprep.subr.bf16.mxu0 %v1224
    %1766 = vmatpush1.bf16.msra.mxu0 %v1223
    %1767 = vmatprep.subr.bf16.mxu0 %v1248
    %1768 = vmatpush1.bf16.msra.mxu0 %v1247
    %1769 = vmatprep.subr.bf16.mxu0 %v1272
    %1770 = vmatpush1.bf16.msra.mxu0 %v1271
    %1771 = vmatprep.subr.bf16.mxu0 %v1296
    %1772 = vmatpush1.bf16.msra.mxu0 %v1295
    %1773 = vmatprep.subr.bf16.mxu0 0
    %1774 = vmatpush1.bf16.msra.mxu0 0
    %1775 = vmatprep.subr.bf16.mxu0 0
    %1776 = vmatpush1.bf16.msra.mxu0 0
    %1777 = vmatprep.subr.bf16.mxu0 0
    %1778 = vmatpush1.bf16.msra.mxu0 0
    %1779 = vmatprep.subr.bf16.mxu0 0
    %1780 = vmatpush1.bf16.msra.mxu0 0
    %1781 = vmatprep.subr.bf16.mxu0 0
    %1782 = vmatpush1.bf16.msra.mxu0 0
    %1783 = vmatprep.subr.bf16.mxu0 0
    %1784 = vmatpush1.bf16.msra.mxu0 0
    %1785 = vmatprep.subr.bf16.mxu0 0
    %1786 = vmatpush1.bf16.msra.mxu0 0
    %1787 = vmatprep.subr.bf16.mxu0 0
    %1788 = vmatpush1.bf16.msra.mxu0 0
    %1789 = vmatprep.mubr.bf16.mxu0 0
    %1790 = vmatmul.mubr.bf16.gmra.mrb[0].mxu0 %v220
    %v1791 = vpop.f32.mrb[0].mxu0
    %v1792 = vadd.f32 %v470, %v1791
    %v1793 = vpop.f32.mrb[0].mxu0
    %v1794 = vadd.f32 %v474, %v1793
    %v1795 = vpop.f32.mrb[0].mxu0
    %v1796 = vadd.f32 %v470, %v1795
    %v1797 = vpop.f32.mrb[0].mxu0
    %v1798 = vadd.f32 %v474, %v1797
    %1799 = vdwg.mxu0
    %1800 = vmatprep.subr.bf16.mxu0 %v1130
    %1801 = vmatpush1.bf16.msra.mxu0 %v1129
    %1802 = vmatprep.subr.bf16.mxu0 %v1154
    %1803 = vmatpush1.bf16.msra.mxu0 %v1153
    %1804 = vmatprep.subr.bf16.mxu0 %v1178
    %1805 = vmatpush1.bf16.msra.mxu0 %v1177
    %1806 = vmatprep.subr.bf16.mxu0 %v1202
    %1807 = vmatpush1.bf16.msra.mxu0 %v1201
    %1808 = vmatprep.subr.bf16.mxu0 %v1226
    %1809 = vmatpush1.bf16.msra.mxu0 %v1225
    %1810 = vmatprep.subr.bf16.mxu0 %v1250
    %1811 = vmatpush1.bf16.msra.mxu0 %v1249
    %1812 = vmatprep.subr.bf16.mxu0 %v1274
    %1813 = vmatpush1.bf16.msra.mxu0 %v1273
    %1814 = vmatprep.subr.bf16.mxu0 %v1298
    %1815 = vmatpush1.bf16.msra.mxu0 %v1297
    %1816 = vmatprep.subr.bf16.mxu0 0
    %1817 = vmatpush1.bf16.msra.mxu0 0
    %1818 = vmatprep.subr.bf16.mxu0 0
    %1819 = vmatpush1.bf16.msra.mxu0 0
    %1820 = vmatprep.subr.bf16.mxu0 0
    %1821 = vmatpush1.bf16.msra.mxu0 0
    %1822 = vmatprep.subr.bf16.mxu0 0
    %1823 = vmatpush1.bf16.msra.mxu0 0
    %1824 = vmatprep.subr.bf16.mxu0 0
    %1825 = vmatpush1.bf16.msra.mxu0 0
    %1826 = vmatprep.subr.bf16.mxu0 0
    %1827 = vmatpush1.bf16.msra.mxu0 0
    %1828 = vmatprep.subr.bf16.mxu0 0
    %1829 = vmatpush1.bf16.msra.mxu0 0
    %1830 = vmatprep.subr.bf16.mxu0 0
    %1831 = vmatpush1.bf16.msra.mxu0 0
    %1832 = vmatprep.mubr.bf16.mxu0 0
    %1833 = vmatmul.mubr.bf16.gmra.mrb[0].mxu0 %v220
    %v1834 = vpop.f32.mrb[0].mxu0
    %v1835 = vadd.f32 %v478, %v1834
    %v1836 = vpop.f32.mrb[0].mxu0
    %v1837 = vadd.f32 %v482, %v1836
    %v1838 = vpop.f32.mrb[0].mxu0
    %v1839 = vadd.f32 %v478, %v1838
    %v1840 = vpop.f32.mrb[0].mxu0
    %v1841 = vadd.f32 %v482, %v1840
    %1842 = vdwg.mxu0
    %1843 = vmatprep.subr.bf16.mxu0 %v1132
    %1844 = vmatpush1.bf16.msra.mxu0 %v1131
    %1845 = vmatprep.subr.bf16.mxu0 %v1156
    %1846 = vmatpush1.bf16.msra.mxu0 %v1155
    %1847 = vmatprep.subr.bf16.mxu0 %v1180
    %1848 = vmatpush1.bf16.msra.mxu0 %v1179
    %1849 = vmatprep.subr.bf16.mxu0 %v1204
    %1850 = vmatpush1.bf16.msra.mxu0 %v1203
    %1851 = vmatprep.subr.bf16.mxu0 %v1228
    %1852 = vmatpush1.bf16.msra.mxu0 %v1227
    %1853 = vmatprep.subr.bf16.mxu0 %v1252
    %1854 = vmatpush1.bf16.msra.mxu0 %v1251
    %1855 = vmatprep.subr.bf16.mxu0 %v1276
    %1856 = vmatpush1.bf16.msra.mxu0 %v1275
    %1857 = vmatprep.subr.bf16.mxu0 %v1300
    %1858 = vmatpush1.bf16.msra.mxu0 %v1299
    %1859 = vmatprep.subr.bf16.mxu0 0
    %1860 = vmatpush1.bf16.msra.mxu0 0
    %1861 = vmatprep.subr.bf16.mxu0 0
    %1862 = vmatpush1.bf16.msra.mxu0 0
    %1863 = vmatprep.subr.bf16.mxu0 0
    %1864 = vmatpush1.bf16.msra.mxu0 0
    %1865 = vmatprep.subr.bf16.mxu0 0
    %1866 = vmatpush1.bf16.msra.mxu0 0
    %1867 = vmatprep.subr.bf16.mxu0 0
    %1868 = vmatpush1.bf16.msra.mxu0 0
    %1869 = vmatprep.subr.bf16.mxu0 0
    %1870 = vmatpush1.bf16.msra.mxu0 0
    %1871 = vmatprep.subr.bf16.mxu0 0
    %1872 = vmatpush1.bf16.msra.mxu0 0
    %1873 = vmatprep.subr.bf16.mxu0 0
    %1874 = vmatpush1.bf16.msra.mxu0 0
    %1875 = vmatprep.mubr.bf16.mxu0 0
    %1876 = vmatmul.mubr.bf16.gmra.mrb[0].mxu0 %v220
    %v1877 = vpop.f32.mrb[0].mxu0
    %v1878 = vadd.f32 %v486, %v1877
    %v1879 = vpop.f32.mrb[0].mxu0
    %v1880 = vadd.f32 %v490, %v1879
    %v1881 = vpop.f32.mrb[0].mxu0
    %v1882 = vadd.f32 %v486, %v1881
    %v1883 = vpop.f32.mrb[0].mxu0
    %v1884 = vadd.f32 %v490, %v1883
    %1885 = vdwg.mxu0
    %1886 = vmatprep.subr.bf16.mxu0 %v1134
    %1887 = vmatpush1.bf16.msra.mxu0 %v1133
    %1888 = vmatprep.subr.bf16.mxu0 %v1158
    %1889 = vmatpush1.bf16.msra.mxu0 %v1157
    %1890 = vmatprep.subr.bf16.mxu0 %v1182
    %1891 = vmatpush1.bf16.msra.mxu0 %v1181
    %1892 = vmatprep.subr.bf16.mxu0 %v1206
    %1893 = vmatpush1.bf16.msra.mxu0 %v1205
    %1894 = vmatprep.subr.bf16.mxu0 %v1230
    %1895 = vmatpush1.bf16.msra.mxu0 %v1229
    %1896 = vmatprep.subr.bf16.mxu0 %v1254
    %1897 = vmatpush1.bf16.msra.mxu0 %v1253
    %1898 = vmatprep.subr.bf16.mxu0 %v1278
    %1899 = vmatpush1.bf16.msra.mxu0 %v1277
    %1900 = vmatprep.subr.bf16.mxu0 %v1302
    %1901 = vmatpush1.bf16.msra.mxu0 %v1301
    %1902 = vmatprep.subr.bf16.mxu0 0
    %1903 = vmatpush1.bf16.msra.mxu0 0
    %1904 = vmatprep.subr.bf16.mxu0 0
    %1905 = vmatpush1.bf16.msra.mxu0 0
    %1906 = vmatprep.subr.bf16.mxu0 0
    %1907 = vmatpush1.bf16.msra.mxu0 0
    %1908 = vmatprep.subr.bf16.mxu0 0
    %1909 = vmatpush1.bf16.msra.mxu0 0
    %1910 = vmatprep.subr.bf16.mxu0 0
    %1911 = vmatpush1.bf16.msra.mxu0 0
    %1912 = vmatprep.subr.bf16.mxu0 0
    %1913 = vmatpush1.bf16.msra.mxu0 0
    %1914 = vmatprep.subr.bf16.mxu0 0
    %1915 = vmatpush1.bf16.msra.mxu0 0
    %1916 = vmatprep.subr.bf16.mxu0 0
    %1917 = vmatpush1.bf16.msra.mxu0 0
    %1918 = vmatprep.mubr.bf16.mxu0 0
    %1919 = vmatmul.mubr.bf16.gmra.mrb[0].mxu0 %v220
    %v1920 = vpop.f32.mrb[0].mxu0
    %v1921 = vadd.f32 %v494, %v1920
    %v1922 = vpop.f32.mrb[0].mxu0
    %v1923 = vadd.f32 %v498, %v1922
    %v1924 = vpop.f32.mrb[0].mxu0
    %v1925 = vadd.f32 %v494, %v1924
    %v1926 = vpop.f32.mrb[0].mxu0
    %v1927 = vadd.f32 %v498, %v1926
    %1928 = vdwg.mxu0
    %1929 = vmatprep.subr.bf16.mxu0 %v1136
    %1930 = vmatpush1.bf16.msra.mxu0 %v1135
    %1931 = vmatprep.subr.bf16.mxu0 %v1160
    %1932 = vmatpush1.bf16.msra.mxu0 %v1159
    %1933 = vmatprep.subr.bf16.mxu0 %v1184
    %1934 = vmatpush1.bf16.msra.mxu0 %v1183
    %1935 = vmatprep.subr.bf16.mxu0 %v1208
    %1936 = vmatpush1.bf16.msra.mxu0 %v1207
    %1937 = vmatprep.subr.bf16.mxu0 %v1232
    %1938 = vmatpush1.bf16.msra.mxu0 %v1231
    %1939 = vmatprep.subr.bf16.mxu0 %v1256
    %1940 = vmatpush1.bf16.msra.mxu0 %v1255
    %1941 = vmatprep.subr.bf16.mxu0 %v1280
    %1942 = vmatpush1.bf16.msra.mxu0 %v1279
    %1943 = vmatprep.subr.bf16.mxu0 %v1304
    %1944 = vmatpush1.bf16.msra.mxu0 %v1303
    %1945 = vmatprep.subr.bf16.mxu0 0
    %1946 = vmatpush1.bf16.msra.mxu0 0
    %1947 = vmatprep.subr.bf16.mxu0 0
    %1948 = vmatpush1.bf16.msra.mxu0 0
    %1949 = vmatprep.subr.bf16.mxu0 0
    %1950 = vmatpush1.bf16.msra.mxu0 0
    %1951 = vmatprep.subr.bf16.mxu0 0
    %1952 = vmatpush1.bf16.msra.mxu0 0
    %1953 = vmatprep.subr.bf16.mxu0 0
    %1954 = vmatpush1.bf16.msra.mxu0 0
    %1955 = vmatprep.subr.bf16.mxu0 0
    %1956 = vmatpush1.bf16.msra.mxu0 0
    %1957 = vmatprep.subr.bf16.mxu0 0
    %1958 = vmatpush1.bf16.msra.mxu0 0
    %1959 = vmatprep.subr.bf16.mxu0 0
    %1960 = vmatpush1.bf16.msra.mxu0 0
    %1961 = vmatprep.mubr.bf16.mxu0 0
    %1962 = vmatmul.mubr.bf16.gmra.mrb[0].mxu0 %v220
    %v1963 = vpop.f32.mrb[0].mxu0
    %v1964 = vadd.f32 %v502, %v1963
    %v1965 = vpop.f32.mrb[0].mxu0
    %v1966 = vadd.f32 %v506, %v1965
    %v1967 = vpop.f32.mrb[0].mxu0
    %v1968 = vadd.f32 %v502, %v1967
    %v1969 = vpop.f32.mrb[0].mxu0
    %v1970 = vadd.f32 %v506, %v1969
    %1971 = vdwg.mxu0
    %1972 = vmatprep.subr.bf16.mxu0 %v1138
    %1973 = vmatpush1.bf16.msra.mxu0 %v1137
    %1974 = vmatprep.subr.bf16.mxu0 %v1162
    %1975 = vmatpush1.bf16.msra.mxu0 %v1161
    %1976 = vmatprep.subr.bf16.mxu0 %v1186
    %1977 = vmatpush1.bf16.msra.mxu0 %v1185
    %1978 = vmatprep.subr.bf16.mxu0 %v1210
    %1979 = vmatpush1.bf16.msra.mxu0 %v1209
    %1980 = vmatprep.subr.bf16.mxu0 %v1234
    %1981 = vmatpush1.bf16.msra.mxu0 %v1233
    %1982 = vmatprep.subr.bf16.mxu0 %v1258
    %1983 = vmatpush1.bf16.msra.mxu0 %v1257
    %1984 = vmatprep.subr.bf16.mxu0 %v1282
    %1985 = vmatpush1.bf16.msra.mxu0 %v1281
    %1986 = vmatprep.subr.bf16.mxu0 %v1306
    %1987 = vmatpush1.bf16.msra.mxu0 %v1305
    %1988 = vmatprep.subr.bf16.mxu0 0
    %1989 = vmatpush1.bf16.msra.mxu0 0
    %1990 = vmatprep.subr.bf16.mxu0 0
    %1991 = vmatpush1.bf16.msra.mxu0 0
    %1992 = vmatprep.subr.bf16.mxu0 0
    %1993 = vmatpush1.bf16.msra.mxu0 0
    %1994 = vmatprep.subr.bf16.mxu0 0
    %1995 = vmatpush1.bf16.msra.mxu0 0
    %1996 = vmatprep.subr.bf16.mxu0 0
    %1997 = vmatpush1.bf16.msra.mxu0 0
    %1998 = vmatprep.subr.bf16.mxu0 0
    %1999 = vmatpush1.bf16.msra.mxu0 0
    %2000 = vmatprep.subr.bf16.mxu0 0
    %2001 = vmatpush1.bf16.msra.mxu0 0
    %2002 = vmatprep.subr.bf16.mxu0 0
    %2003 = vmatpush1.bf16.msra.mxu0 0
    %2004 = vmatprep.mubr.bf16.mxu0 0
    %2005 = vmatmul.mubr.bf16.gmra.mrb[0].mxu0 %v220
    %v2006 = vpop.f32.mrb[0].mxu0
    %v2007 = vadd.f32 %v510, %v2006
    %v2008 = vpop.f32.mrb[0].mxu0
    %v2009 = vadd.f32 %v514, %v2008
    %v2010 = vpop.f32.mrb[0].mxu0
    %v2011 = vadd.f32 %v510, %v2010
    %v2012 = vpop.f32.mrb[0].mxu0
    %v2013 = vadd.f32 %v514, %v2012
    %2014 = vdwg.mxu0
    %v2015 = vpack.c.bf16 %v1538, %v1534
    %v2016 = vpack.c.bf16 %v1540, %v1536
    %v2017 = vpack.c.bf16 %v1581, %v1577
    %v2018 = vpack.c.bf16 %v1583, %v1579
    %v2019 = vpack.c.bf16 %v1624, %v1620
    %v2020 = vpack.c.bf16 %v1626, %v1622
    %v2021 = vpack.c.bf16 %v1667, %v1663
    %v2022 = vpack.c.bf16 %v1669, %v1665
    %v2023 = vpack.c.bf16 %v1710, %v1706
    %v2024 = vpack.c.bf16 %v1712, %v1708
    %v2025 = vpack.c.bf16 %v1753, %v1749
    %v2026 = vpack.c.bf16 %v1755, %v1751
    %v2027 = vpack.c.bf16 %v1796, %v1792
    %v2028 = vpack.c.bf16 %v1798, %v1794
    %v2029 = vpack.c.bf16 %v1839, %v1835
    %v2030 = vpack.c.bf16 %v1841, %v1837
    %v2031 = vpack.c.bf16 %v1882, %v1878
    %v2032 = vpack.c.bf16 %v1884, %v1880
    %v2033 = vpack.c.bf16 %v1925, %v1921
    %v2034 = vpack.c.bf16 %v1927, %v1923
    %v2035 = vpack.c.bf16 %v1968, %v1964
    %v2036 = vpack.c.bf16 %v1970, %v1966
    %v2037 = vpack.c.bf16 %v2011, %v2007
    %v2038 = vpack.c.bf16 %v2013, %v2009
    %v2039 = vld [vmem:[#allocation10] sm:$0xff]
    %v2040 = vld [vmem:[#allocation10 + $0x8] sm:$0xff]
    %v2041 = vld [vmem:[#allocation10 + $0x10] sm:$0xff]
    %v2042 = vld [vmem:[#allocation10 + $0x18] sm:$0xff]
    %v2043 = vld [vmem:[#allocation10 + $0x20] sm:$0xff]
    %v2044 = vld [vmem:[#allocation10 + $0x28] sm:$0xff]
    %v2045 = vld [vmem:[#allocation10 + $0x30] sm:$0xff]
    %v2046 = vld [vmem:[#allocation10 + $0x38] sm:$0xff]
    %v2047 = vld [vmem:[#allocation10 + $0x40] sm:$0xff]
    %v2048 = vld [vmem:[#allocation10 + $0x48] sm:$0xff]
    %v2049 = vld [vmem:[#allocation10 + $0x50] sm:$0xff]
    %v2050 = vld [vmem:[#allocation10 + $0x58] sm:$0xff]
    %v2051 = vld [vmem:[#allocation10 + $0x60] sm:$0xff]
    %v2052 = vld [vmem:[#allocation10 + $0x68] sm:$0xff]
    %v2053 = vld [vmem:[#allocation10 + $0x70] sm:$0xff]
    %v2054 = vld [vmem:[#allocation10 + $0x78] sm:$0xff]
    %v2055 = vld [vmem:[#allocation10 + $0x80] sm:$0xff]
    %v2056 = vld [vmem:[#allocation10 + $0x88] sm:$0xff]
    %v2057 = vld [vmem:[#allocation10 + $0x90] sm:$0xff]
    %v2058 = vld [vmem:[#allocation10 + $0x98] sm:$0xff]
    %v2059 = vld [vmem:[#allocation10 + $0xa0] sm:$0xff]
    %v2060 = vld [vmem:[#allocation10 + $0xa8] sm:$0xff]
    %v2061 = vld [vmem:[#allocation10 + $0xb0] sm:$0xff]
    %v2062 = vld [vmem:[#allocation10 + $0xb8] sm:$0xff]
    %v2063 = vld [vmem:[%s6] sm:$0x1]
    %v2065 = vlaneseq
    %v2066 = vshrl.u32 %v2065, 7
    %v2067 = vsub.s32 0, %v2066
    %v2068 = vrot.slane %v2063, %v2067
    %v2094 = vunpack.c.l.b16 %v2039
    %v2095 = vunpack.c.h.b16 %v2039
    %v2096 = vunpack.c.l.b16 %v2040
    %v2097 = vunpack.c.h.b16 %v2040
    %v2098 = vunpack.c.l.b16 %v2041
    %v2099 = vunpack.c.h.b16 %v2041
    %v2100 = vunpack.c.l.b16 %v2042
    %v2101 = vunpack.c.h.b16 %v2042
    %v2102 = vunpack.c.l.b16 %v2043
    %v2103 = vunpack.c.h.b16 %v2043
    %v2104 = vunpack.c.l.b16 %v2044
    %v2105 = vunpack.c.h.b16 %v2044
    %v2106 = vunpack.c.l.b16 %v2045
    %v2107 = vunpack.c.h.b16 %v2045
    %v2108 = vunpack.c.l.b16 %v2046
    %v2109 = vunpack.c.h.b16 %v2046
    %v2110 = vunpack.c.l.b16 %v2047
    %v2111 = vunpack.c.h.b16 %v2047
    %v2112 = vunpack.c.l.b16 %v2048
    %v2113 = vunpack.c.h.b16 %v2048
    %v2114 = vunpack.c.l.b16 %v2049
    %v2115 = vunpack.c.h.b16 %v2049
    %v2116 = vunpack.c.l.b16 %v2050
    %v2117 = vunpack.c.h.b16 %v2050
    %v2118 = vunpack.c.l.b16 %v2051
    %v2119 = vunpack.c.h.b16 %v2051
    %v2120 = vunpack.c.l.b16 %v2052
    %v2121 = vunpack.c.h.b16 %v2052
    %v2122 = vunpack.c.l.b16 %v2053
    %v2123 = vunpack.c.h.b16 %v2053
    %v2124 = vunpack.c.l.b16 %v2054
    %v2125 = vunpack.c.h.b16 %v2054
    %v2126 = vunpack.c.l.b16 %v2055
    %v2127 = vunpack.c.h.b16 %v2055
    %v2128 = vunpack.c.l.b16 %v2056
    %v2129 = vunpack.c.h.b16 %v2056
    %v2130 = vunpack.c.l.b16 %v2057
    %v2131 = vunpack.c.h.b16 %v2057
    %v2132 = vunpack.c.l.b16 %v2058
    %v2133 = vunpack.c.h.b16 %v2058
    %v2134 = vunpack.c.l.b16 %v2059
    %v2135 = vunpack.c.h.b16 %v2059
    %v2136 = vunpack.c.l.b16 %v2060
    %v2137 = vunpack.c.h.b16 %v2060
    %v2138 = vunpack.c.l.b16 %v2061
    %v2139 = vunpack.c.h.b16 %v2061
    %v2140 = vunpack.c.l.b16 %v2062
    %v2141 = vunpack.c.h.b16 %v2062
    %v2142 = vpack.c.b16 %v2118, %v2094
    %v2143 = vpack.c.b16 %v2119, %v2095
    %v2144 = vpack.c.b16 %v2120, %v2096
    %v2145 = vpack.c.b16 %v2121, %v2097
    %v2146 = vpack.c.b16 %v2122, %v2098
    %v2147 = vpack.c.b16 %v2123, %v2099
    %v2148 = vpack.c.b16 %v2124, %v2100
    %v2149 = vpack.c.b16 %v2125, %v2101
    %v2150 = vpack.c.b16 %v2126, %v2102
    %v2151 = vpack.c.b16 %v2127, %v2103
    %v2152 = vpack.c.b16 %v2128, %v2104
    %v2153 = vpack.c.b16 %v2129, %v2105
    %v2154 = vpack.c.b16 %v2130, %v2106
    %v2155 = vpack.c.b16 %v2131, %v2107
    %v2156 = vpack.c.b16 %v2132, %v2108
    %v2157 = vpack.c.b16 %v2133, %v2109
    %v2158 = vpack.c.b16 %v2134, %v2110
    %v2159 = vpack.c.b16 %v2135, %v2111
    %v2160 = vpack.c.b16 %v2136, %v2112
    %v2161 = vpack.c.b16 %v2137, %v2113
    %v2162 = vpack.c.b16 %v2138, %v2114
    %v2163 = vpack.c.b16 %v2139, %v2115
    %v2164 = vpack.c.b16 %v2140, %v2116
    %v2165 = vpack.c.b16 %v2141, %v2117
    %2190 = vmatprep.subr.bf16.mxu0 %v2143
    %2191 = vmatpush1.bf16.xpose.msra.mxu0 %v2142
    %2192 = vmatprep.subr.bf16.mxu0 0
    %2193 = vmatpush1.bf16.xpose.msra.mxu0 0
    %2194 = vmatprep.subr.bf16.mxu0 0
    %2195 = vmatpush1.bf16.xpose.msra.mxu0 0
    %2196 = vmatprep.subr.bf16.mxu0 0
    %2197 = vmatpush1.bf16.xpose.msra.mxu0 0
    %2198 = vmatprep.subr.bf16.mxu0 0
    %2199 = vmatpush1.bf16.xpose.msra.mxu0 0
    %2200 = vmatprep.subr.bf16.mxu0 0
    %2201 = vmatpush1.bf16.xpose.msra.mxu0 0
    %2202 = vmatprep.subr.bf16.mxu0 0
    %2203 = vmatpush1.bf16.xpose.msra.mxu0 0
    %2204 = vmatprep.subr.bf16.mxu0 0
    %2205 = vmatpush1.bf16.xpose.msra.mxu0 0
    %2206 = vmatprep.subr.bf16.mxu0 0
    %2207 = vmatpush1.bf16.xpose.msra.mxu0 0
    %2208 = vmatprep.subr.bf16.mxu0 0
    %2209 = vmatpush1.bf16.xpose.msra.mxu0 0
    %2210 = vmatprep.subr.bf16.mxu0 0
    %2211 = vmatpush1.bf16.xpose.msra.mxu0 0
    %2212 = vmatprep.subr.bf16.mxu0 0
    %2213 = vmatpush1.bf16.xpose.msra.mxu0 0
    %2214 = vmatprep.subr.bf16.mxu0 0
    %2215 = vmatpush1.bf16.xpose.msra.mxu0 0
    %2216 = vmatprep.subr.bf16.mxu0 0
    %2217 = vmatpush1.bf16.xpose.msra.mxu0 0
    %2218 = vmatprep.subr.bf16.mxu0 0
    %2219 = vmatpush1.bf16.xpose.msra.mxu0 0
    %2220 = vmatprep.subr.bf16.mxu0 0
    %2221 = vmatpush1.bf16.xpose.msra.mxu0 0
    %2222 = vmatprep.mubr.bf16.mxu0 %v2016
    %2223 = vmatmul.mubr.bf16.gmra.mrb[0].mxu0 %v2015
    %v2224 = vpop.f32.mrb[0].mxu0
    %v2225 = vadd.f32 %v2068, %v2224
    %v2226 = vpop.f32.mrb[0].mxu0
    %v2227 = vpop.f32.mrb[0].mxu0
    %v2228 = vadd.f32 %v2068, %v2227
    %v2229 = vpop.f32.mrb[0].mxu0
    %2230 = vdwg.mxu0
    %2231 = vmatprep.subr.bf16.mxu0 %v2145
    %2232 = vmatpush1.bf16.xpose.msra.mxu0 %v2144
    %2233 = vmatprep.subr.bf16.mxu0 0
    %2234 = vmatpush1.bf16.xpose.msra.mxu0 0
    %2235 = vmatprep.subr.bf16.mxu0 0
    %2236 = vmatpush1.bf16.xpose.msra.mxu0 0
    %2237 = vmatprep.subr.bf16.mxu0 0
    %2238 = vmatpush1.bf16.xpose.msra.mxu0 0
    %2239 = vmatprep.subr.bf16.mxu0 0
    %2240 = vmatpush1.bf16.xpose.msra.mxu0 0
    %2241 = vmatprep.subr.bf16.mxu0 0
    %2242 = vmatpush1.bf16.xpose.msra.mxu0 0
    %2243 = vmatprep.subr.bf16.mxu0 0
    %2244 = vmatpush1.bf16.xpose.msra.mxu0 0
    %2245 = vmatprep.subr.bf16.mxu0 0
    %2246 = vmatpush1.bf16.xpose.msra.mxu0 0
    %2247 = vmatprep.subr.bf16.mxu0 0
    %2248 = vmatpush1.bf16.xpose.msra.mxu0 0
    %2249 = vmatprep.subr.bf16.mxu0 0
    %2250 = vmatpush1.bf16.xpose.msra.mxu0 0
    %2251 = vmatprep.subr.bf16.mxu0 0
    %2252 = vmatpush1.bf16.xpose.msra.mxu0 0
    %2253 = vmatprep.subr.bf16.mxu0 0
    %2254 = vmatpush1.bf16.xpose.msra.mxu0 0
    %2255 = vmatprep.subr.bf16.mxu0 0
    %2256 = vmatpush1.bf16.xpose.msra.mxu0 0
    %2257 = vmatprep.subr.bf16.mxu0 0
    %2258 = vmatpush1.bf16.xpose.msra.mxu0 0
    %2259 = vmatprep.subr.bf16.mxu0 0
    %2260 = vmatpush1.bf16.xpose.msra.mxu0 0
    %2261 = vmatprep.subr.bf16.mxu0 0
    %2262 = vmatpush1.bf16.xpose.msra.mxu0 0
    %2263 = vmatprep.mubr.bf16.mxu0 %v2018
    %2264 = vmatmul.mubr.bf16.gmra.mrb[0].mxu0 %v2017
    %v2265 = vpop.f32.mrb[0].mxu0
    %v2266 = vadd.f32 %v2225, %v2265
    %v2267 = vpop.f32.mrb[0].mxu0
    %v2268 = vpop.f32.mrb[0].mxu0
    %v2269 = vadd.f32 %v2228, %v2268
    %v2270 = vpop.f32.mrb[0].mxu0
    %2271 = vdwg.mxu0
    %2272 = vmatprep.subr.bf16.mxu0 %v2147
    %2273 = vmatpush1.bf16.xpose.msra.mxu0 %v2146
    %2274 = vmatprep.subr.bf16.mxu0 0
    %2275 = vmatpush1.bf16.xpose.msra.mxu0 0
    %2276 = vmatprep.subr.bf16.mxu0 0
    %2277 = vmatpush1.bf16.xpose.msra.mxu0 0
    %2278 = vmatprep.subr.bf16.mxu0 0
    %2279 = vmatpush1.bf16.xpose.msra.mxu0 0
    %2280 = vmatprep.subr.bf16.mxu0 0
    %2281 = vmatpush1.bf16.xpose.msra.mxu0 0
    %2282 = vmatprep.subr.bf16.mxu0 0
    %2283 = vmatpush1.bf16.xpose.msra.mxu0 0
    %2284 = vmatprep.subr.bf16.mxu0 0
    %2285 = vmatpush1.bf16.xpose.msra.mxu0 0
    %2286 = vmatprep.subr.bf16.mxu0 0
    %2287 = vmatpush1.bf16.xpose.msra.mxu0 0
    %2288 = vmatprep.subr.bf16.mxu0 0
    %2289 = vmatpush1.bf16.xpose.msra.mxu0 0
    %2290 = vmatprep.subr.bf16.mxu0 0
    %2291 = vmatpush1.bf16.xpose.msra.mxu0 0
    %2292 = vmatprep.subr.bf16.mxu0 0
    %2293 = vmatpush1.bf16.xpose.msra.mxu0 0
    %2294 = vmatprep.subr.bf16.mxu0 0
    %2295 = vmatpush1.bf16.xpose.msra.mxu0 0
    %2296 = vmatprep.subr.bf16.mxu0 0
    %2297 = vmatpush1.bf16.xpose.msra.mxu0 0
    %2298 = vmatprep.subr.bf16.mxu0 0
    %2299 = vmatpush1.bf16.xpose.msra.mxu0 0
    %2300 = vmatprep.subr.bf16.mxu0 0
    %2301 = vmatpush1.bf16.xpose.msra.mxu0 0
    %2302 = vmatprep.subr.bf16.mxu0 0
    %2303 = vmatpush1.bf16.xpose.msra.mxu0 0
    %2304 = vmatprep.mubr.bf16.mxu0 %v2020
    %2305 = vmatmul.mubr.bf16.gmra.mrb[0].mxu0 %v2019
    %v2306 = vpop.f32.mrb[0].mxu0
    %v2307 = vadd.f32 %v2266, %v2306
    %v2308 = vpop.f32.mrb[0].mxu0
    %v2309 = vpop.f32.mrb[0].mxu0
    %v2310 = vadd.f32 %v2269, %v2309
    %v2311 = vpop.f32.mrb[0].mxu0
    %2312 = vdwg.mxu0
    %2313 = vmatprep.subr.bf16.mxu0 %v2149
    %2314 = vmatpush1.bf16.xpose.msra.mxu0 %v2148
    %2315 = vmatprep.subr.bf16.mxu0 0
    %2316 = vmatpush1.bf16.xpose.msra.mxu0 0
    %2317 = vmatprep.subr.bf16.mxu0 0
    %2318 = vmatpush1.bf16.xpose.msra.mxu0 0
    %2319 = vmatprep.subr.bf16.mxu0 0
    %2320 = vmatpush1.bf16.xpose.msra.mxu0 0
    %2321 = vmatprep.subr.bf16.mxu0 0
    %2322 = vmatpush1.bf16.xpose.msra.mxu0 0
    %2323 = vmatprep.subr.bf16.mxu0 0
    %2324 = vmatpush1.bf16.xpose.msra.mxu0 0
    %2325 = vmatprep.subr.bf16.mxu0 0
    %2326 = vmatpush1.bf16.xpose.msra.mxu0 0
    %2327 = vmatprep.subr.bf16.mxu0 0
    %2328 = vmatpush1.bf16.xpose.msra.mxu0 0
    %2329 = vmatprep.subr.bf16.mxu0 0
    %2330 = vmatpush1.bf16.xpose.msra.mxu0 0
    %2331 = vmatprep.subr.bf16.mxu0 0
    %2332 = vmatpush1.bf16.xpose.msra.mxu0 0
    %2333 = vmatprep.subr.bf16.mxu0 0
    %2334 = vmatpush1.bf16.xpose.msra.mxu0 0
    %2335 = vmatprep.subr.bf16.mxu0 0
    %2336 = vmatpush1.bf16.xpose.msra.mxu0 0
    %2337 = vmatprep.subr.bf16.mxu0 0
    %2338 = vmatpush1.bf16.xpose.msra.mxu0 0
    %2339 = vmatprep.subr.bf16.mxu0 0
    %2340 = vmatpush1.bf16.xpose.msra.mxu0 0
    %2341 = vmatprep.subr.bf16.mxu0 0
    %2342 = vmatpush1.bf16.xpose.msra.mxu0 0
    %2343 = vmatprep.subr.bf16.mxu0 0
    %2344 = vmatpush1.bf16.xpose.msra.mxu0 0
    %2345 = vmatprep.mubr.bf16.mxu0 %v2022
    %2346 = vmatmul.mubr.bf16.gmra.mrb[0].mxu0 %v2021
    %v2347 = vpop.f32.mrb[0].mxu0
    %v2348 = vadd.f32 %v2307, %v2347
    %v2349 = vpop.f32.mrb[0].mxu0
    %v2350 = vpop.f32.mrb[0].mxu0
    %v2351 = vadd.f32 %v2310, %v2350
    %v2352 = vpop.f32.mrb[0].mxu0
    %2353 = vdwg.mxu0
    %2354 = vmatprep.subr.bf16.mxu0 %v2151
    %2355 = vmatpush1.bf16.xpose.msra.mxu0 %v2150
    %2356 = vmatprep.subr.bf16.mxu0 0
    %2357 = vmatpush1.bf16.xpose.msra.mxu0 0
    %2358 = vmatprep.subr.bf16.mxu0 0
    %2359 = vmatpush1.bf16.xpose.msra.mxu0 0
    %2360 = vmatprep.subr.bf16.mxu0 0
    %2361 = vmatpush1.bf16.xpose.msra.mxu0 0
    %2362 = vmatprep.subr.bf16.mxu0 0
    %2363 = vmatpush1.bf16.xpose.msra.mxu0 0
    %2364 = vmatprep.subr.bf16.mxu0 0
    %2365 = vmatpush1.bf16.xpose.msra.mxu0 0
    %2366 = vmatprep.subr.bf16.mxu0 0
    %2367 = vmatpush1.bf16.xpose.msra.mxu0 0
    %2368 = vmatprep.subr.bf16.mxu0 0
    %2369 = vmatpush1.bf16.xpose.msra.mxu0 0
    %2370 = vmatprep.subr.bf16.mxu0 0
    %2371 = vmatpush1.bf16.xpose.msra.mxu0 0
    %2372 = vmatprep.subr.bf16.mxu0 0
    %2373 = vmatpush1.bf16.xpose.msra.mxu0 0
    %2374 = vmatprep.subr.bf16.mxu0 0
    %2375 = vmatpush1.bf16.xpose.msra.mxu0 0
    %2376 = vmatprep.subr.bf16.mxu0 0
    %2377 = vmatpush1.bf16.xpose.msra.mxu0 0
    %2378 = vmatprep.subr.bf16.mxu0 0
    %2379 = vmatpush1.bf16.xpose.msra.mxu0 0
    %2380 = vmatprep.subr.bf16.mxu0 0
    %2381 = vmatpush1.bf16.xpose.msra.mxu0 0
    %2382 = vmatprep.subr.bf16.mxu0 0
    %2383 = vmatpush1.bf16.xpose.msra.mxu0 0
    %2384 = vmatprep.subr.bf16.mxu0 0
    %2385 = vmatpush1.bf16.xpose.msra.mxu0 0
    %2386 = vmatprep.mubr.bf16.mxu0 %v2024
    %2387 = vmatmul.mubr.bf16.gmra.mrb[0].mxu0 %v2023
    %v2388 = vpop.f32.mrb[0].mxu0
    %v2389 = vadd.f32 %v2348, %v2388
    %v2390 = vpop.f32.mrb[0].mxu0
    %v2391 = vpop.f32.mrb[0].mxu0
    %v2392 = vadd.f32 %v2351, %v2391
    %v2393 = vpop.f32.mrb[0].mxu0
    %2394 = vdwg.mxu0
    %2395 = vmatprep.subr.bf16.mxu0 %v2153
    %2396 = vmatpush1.bf16.xpose.msra.mxu0 %v2152
    %2397 = vmatprep.subr.bf16.mxu0 0
    %2398 = vmatpush1.bf16.xpose.msra.mxu0 0
    %2399 = vmatprep.subr.bf16.mxu0 0
    %2400 = vmatpush1.bf16.xpose.msra.mxu0 0
    %2401 = vmatprep.subr.bf16.mxu0 0
    %2402 = vmatpush1.bf16.xpose.msra.mxu0 0
    %2403 = vmatprep.subr.bf16.mxu0 0
    %2404 = vmatpush1.bf16.xpose.msra.mxu0 0
    %2405 = vmatprep.subr.bf16.mxu0 0
    %2406 = vmatpush1.bf16.xpose.msra.mxu0 0
    %2407 = vmatprep.subr.bf16.mxu0 0
    %2408 = vmatpush1.bf16.xpose.msra.mxu0 0
    %2409 = vmatprep.subr.bf16.mxu0 0
    %2410 = vmatpush1.bf16.xpose.msra.mxu0 0
    %2411 = vmatprep.subr.bf16.mxu0 0
    %2412 = vmatpush1.bf16.xpose.msra.mxu0 0
    %2413 = vmatprep.subr.bf16.mxu0 0
    %2414 = vmatpush1.bf16.xpose.msra.mxu0 0
    %2415 = vmatprep.subr.bf16.mxu0 0
    %2416 = vmatpush1.bf16.xpose.msra.mxu0 0
    %2417 = vmatprep.subr.bf16.mxu0 0
    %2418 = vmatpush1.bf16.xpose.msra.mxu0 0
    %2419 = vmatprep.subr.bf16.mxu0 0
    %2420 = vmatpush1.bf16.xpose.msra.mxu0 0
    %2421 = vmatprep.subr.bf16.mxu0 0
    %2422 = vmatpush1.bf16.xpose.msra.mxu0 0
    %2423 = vmatprep.subr.bf16.mxu0 0
    %2424 = vmatpush1.bf16.xpose.msra.mxu0 0
    %2425 = vmatprep.subr.bf16.mxu0 0
    %2426 = vmatpush1.bf16.xpose.msra.mxu0 0
    %2427 = vmatprep.mubr.bf16.mxu0 %v2026
    %2428 = vmatmul.mubr.bf16.gmra.mrb[0].mxu0 %v2025
    %v2429 = vpop.f32.mrb[0].mxu0
    %v2430 = vadd.f32 %v2389, %v2429
    %v2431 = vpop.f32.mrb[0].mxu0
    %v2432 = vpop.f32.mrb[0].mxu0
    %v2433 = vadd.f32 %v2392, %v2432
    %v2434 = vpop.f32.mrb[0].mxu0
    %2435 = vdwg.mxu0
    %2436 = vmatprep.subr.bf16.mxu0 %v2155
    %2437 = vmatpush1.bf16.xpose.msra.mxu0 %v2154
    %2438 = vmatprep.subr.bf16.mxu0 0
    %2439 = vmatpush1.bf16.xpose.msra.mxu0 0
    %2440 = vmatprep.subr.bf16.mxu0 0
    %2441 = vmatpush1.bf16.xpose.msra.mxu0 0
    %2442 = vmatprep.subr.bf16.mxu0 0
    %2443 = vmatpush1.bf16.xpose.msra.mxu0 0
    %2444 = vmatprep.subr.bf16.mxu0 0
    %2445 = vmatpush1.bf16.xpose.msra.mxu0 0
    %2446 = vmatprep.subr.bf16.mxu0 0
    %2447 = vmatpush1.bf16.xpose.msra.mxu0 0
    %2448 = vmatprep.subr.bf16.mxu0 0
    %2449 = vmatpush1.bf16.xpose.msra.mxu0 0
    %2450 = vmatprep.subr.bf16.mxu0 0
    %2451 = vmatpush1.bf16.xpose.msra.mxu0 0
    %2452 = vmatprep.subr.bf16.mxu0 0
    %2453 = vmatpush1.bf16.xpose.msra.mxu0 0
    %2454 = vmatprep.subr.bf16.mxu0 0
    %2455 = vmatpush1.bf16.xpose.msra.mxu0 0
    %2456 = vmatprep.subr.bf16.mxu0 0
    %2457 = vmatpush1.bf16.xpose.msra.mxu0 0
    %2458 = vmatprep.subr.bf16.mxu0 0
    %2459 = vmatpush1.bf16.xpose.msra.mxu0 0
    %2460 = vmatprep.subr.bf16.mxu0 0
    %2461 = vmatpush1.bf16.xpose.msra.mxu0 0
    %2462 = vmatprep.subr.bf16.mxu0 0
    %2463 = vmatpush1.bf16.xpose.msra.mxu0 0
    %2464 = vmatprep.subr.bf16.mxu0 0
    %2465 = vmatpush1.bf16.xpose.msra.mxu0 0
    %2466 = vmatprep.subr.bf16.mxu0 0
    %2467 = vmatpush1.bf16.xpose.msra.mxu0 0
    %2468 = vmatprep.mubr.bf16.mxu0 %v2028
    %2469 = vmatmul.mubr.bf16.gmra.mrb[0].mxu0 %v2027
    %v2470 = vpop.f32.mrb[0].mxu0
    %v2471 = vadd.f32 %v2430, %v2470
    %v2472 = vpop.f32.mrb[0].mxu0
    %v2473 = vpop.f32.mrb[0].mxu0
    %v2474 = vadd.f32 %v2433, %v2473
    %v2475 = vpop.f32.mrb[0].mxu0
    %2476 = vdwg.mxu0
    %2477 = vmatprep.subr.bf16.mxu0 %v2157
    %2478 = vmatpush1.bf16.xpose.msra.mxu0 %v2156
    %2479 = vmatprep.subr.bf16.mxu0 0
    %2480 = vmatpush1.bf16.xpose.msra.mxu0 0
    %2481 = vmatprep.subr.bf16.mxu0 0
    %2482 = vmatpush1.bf16.xpose.msra.mxu0 0
    %2483 = vmatprep.subr.bf16.mxu0 0
    %2484 = vmatpush1.bf16.xpose.msra.mxu0 0
    %2485 = vmatprep.subr.bf16.mxu0 0
    %2486 = vmatpush1.bf16.xpose.msra.mxu0 0
    %2487 = vmatprep.subr.bf16.mxu0 0
    %2488 = vmatpush1.bf16.xpose.msra.mxu0 0
    %2489 = vmatprep.subr.bf16.mxu0 0
    %2490 = vmatpush1.bf16.xpose.msra.mxu0 0
    %2491 = vmatprep.subr.bf16.mxu0 0
    %2492 = vmatpush1.bf16.xpose.msra.mxu0 0
    %2493 = vmatprep.subr.bf16.mxu0 0
    %2494 = vmatpush1.bf16.xpose.msra.mxu0 0
    %2495 = vmatprep.subr.bf16.mxu0 0
    %2496 = vmatpush1.bf16.xpose.msra.mxu0 0
    %2497 = vmatprep.subr.bf16.mxu0 0
    %2498 = vmatpush1.bf16.xpose.msra.mxu0 0
    %2499 = vmatprep.subr.bf16.mxu0 0
    %2500 = vmatpush1.bf16.xpose.msra.mxu0 0
    %2501 = vmatprep.subr.bf16.mxu0 0
    %2502 = vmatpush1.bf16.xpose.msra.mxu0 0
    %2503 = vmatprep.subr.bf16.mxu0 0
    %2504 = vmatpush1.bf16.xpose.msra.mxu0 0
    %2505 = vmatprep.subr.bf16.mxu0 0
    %2506 = vmatpush1.bf16.xpose.msra.mxu0 0
    %2507 = vmatprep.subr.bf16.mxu0 0
    %2508 = vmatpush1.bf16.xpose.msra.mxu0 0
    %2509 = vmatprep.mubr.bf16.mxu0 %v2030
    %2510 = vmatmul.mubr.bf16.gmra.mrb[0].mxu0 %v2029
    %v2511 = vpop.f32.mrb[0].mxu0
    %v2512 = vadd.f32 %v2471, %v2511
    %v2513 = vpop.f32.mrb[0].mxu0
    %v2514 = vpop.f32.mrb[0].mxu0
    %v2515 = vadd.f32 %v2474, %v2514
    %v2516 = vpop.f32.mrb[0].mxu0
    %2517 = vdwg.mxu0
    %2518 = vmatprep.subr.bf16.mxu0 %v2159
    %2519 = vmatpush1.bf16.xpose.msra.mxu0 %v2158
    %2520 = vmatprep.subr.bf16.mxu0 0
    %2521 = vmatpush1.bf16.xpose.msra.mxu0 0
    %2522 = vmatprep.subr.bf16.mxu0 0
    %2523 = vmatpush1.bf16.xpose.msra.mxu0 0
    %2524 = vmatprep.subr.bf16.mxu0 0
    %2525 = vmatpush1.bf16.xpose.msra.mxu0 0
    %2526 = vmatprep.subr.bf16.mxu0 0
    %2527 = vmatpush1.bf16.xpose.msra.mxu0 0
    %2528 = vmatprep.subr.bf16.mxu0 0
    %2529 = vmatpush1.bf16.xpose.msra.mxu0 0
    %2530 = vmatprep.subr.bf16.mxu0 0
    %2531 = vmatpush1.bf16.xpose.msra.mxu0 0
    %2532 = vmatprep.subr.bf16.mxu0 0
    %2533 = vmatpush1.bf16.xpose.msra.mxu0 0
    %2534 = vmatprep.subr.bf16.mxu0 0
    %2535 = vmatpush1.bf16.xpose.msra.mxu0 0
    %2536 = vmatprep.subr.bf16.mxu0 0
    %2537 = vmatpush1.bf16.xpose.msra.mxu0 0
    %2538 = vmatprep.subr.bf16.mxu0 0
    %2539 = vmatpush1.bf16.xpose.msra.mxu0 0
    %2540 = vmatprep.subr.bf16.mxu0 0
    %2541 = vmatpush1.bf16.xpose.msra.mxu0 0
    %2542 = vmatprep.subr.bf16.mxu0 0
    %2543 = vmatpush1.bf16.xpose.msra.mxu0 0
    %2544 = vmatprep.subr.bf16.mxu0 0
    %2545 = vmatpush1.bf16.xpose.msra.mxu0 0
    %2546 = vmatprep.subr.bf16.mxu0 0
    %2547 = vmatpush1.bf16.xpose.msra.mxu0 0
    %2548 = vmatprep.subr.bf16.mxu0 0
    %2549 = vmatpush1.bf16.xpose.msra.mxu0 0
    %2550 = vmatprep.mubr.bf16.mxu0 %v2032
    %2551 = vmatmul.mubr.bf16.gmra.mrb[0].mxu0 %v2031
    %v2552 = vpop.f32.mrb[0].mxu0
    %v2553 = vadd.f32 %v2512, %v2552
    %v2554 = vpop.f32.mrb[0].mxu0
    %v2555 = vpop.f32.mrb[0].mxu0
    %v2556 = vadd.f32 %v2515, %v2555
    %v2557 = vpop.f32.mrb[0].mxu0
    %2558 = vdwg.mxu0
    %2559 = vmatprep.subr.bf16.mxu0 %v2161
    %2560 = vmatpush1.bf16.xpose.msra.mxu0 %v2160
    %2561 = vmatprep.subr.bf16.mxu0 0
    %2562 = vmatpush1.bf16.xpose.msra.mxu0 0
    %2563 = vmatprep.subr.bf16.mxu0 0
    %2564 = vmatpush1.bf16.xpose.msra.mxu0 0
    %2565 = vmatprep.subr.bf16.mxu0 0
    %2566 = vmatpush1.bf16.xpose.msra.mxu0 0
    %2567 = vmatprep.subr.bf16.mxu0 0
    %2568 = vmatpush1.bf16.xpose.msra.mxu0 0
    %2569 = vmatprep.subr.bf16.mxu0 0
    %2570 = vmatpush1.bf16.xpose.msra.mxu0 0
    %2571 = vmatprep.subr.bf16.mxu0 0
    %2572 = vmatpush1.bf16.xpose.msra.mxu0 0
    %2573 = vmatprep.subr.bf16.mxu0 0
    %2574 = vmatpush1.bf16.xpose.msra.mxu0 0
    %2575 = vmatprep.subr.bf16.mxu0 0
    %2576 = vmatpush1.bf16.xpose.msra.mxu0 0
    %2577 = vmatprep.subr.bf16.mxu0 0
    %2578 = vmatpush1.bf16.xpose.msra.mxu0 0
    %2579 = vmatprep.subr.bf16.mxu0 0
    %2580 = vmatpush1.bf16.xpose.msra.mxu0 0
    %2581 = vmatprep.subr.bf16.mxu0 0
    %2582 = vmatpush1.bf16.xpose.msra.mxu0 0
    %2583 = vmatprep.subr.bf16.mxu0 0
    %2584 = vmatpush1.bf16.xpose.msra.mxu0 0
    %2585 = vmatprep.subr.bf16.mxu0 0
    %2586 = vmatpush1.bf16.xpose.msra.mxu0 0
    %2587 = vmatprep.subr.bf16.mxu0 0
    %2588 = vmatpush1.bf16.xpose.msra.mxu0 0
    %2589 = vmatprep.subr.bf16.mxu0 0
    %2590 = vmatpush1.bf16.xpose.msra.mxu0 0
    %2591 = vmatprep.mubr.bf16.mxu0 %v2034
    %2592 = vmatmul.mubr.bf16.gmra.mrb[0].mxu0 %v2033
    %v2593 = vpop.f32.mrb[0].mxu0
    %v2594 = vadd.f32 %v2553, %v2593
    %v2595 = vpop.f32.mrb[0].mxu0
    %v2596 = vpop.f32.mrb[0].mxu0
    %v2597 = vadd.f32 %v2556, %v2596
    %v2598 = vpop.f32.mrb[0].mxu0
    %2599 = vdwg.mxu0
    %2600 = vmatprep.subr.bf16.mxu0 %v2163
    %2601 = vmatpush1.bf16.xpose.msra.mxu0 %v2162
    %2602 = vmatprep.subr.bf16.mxu0 0
    %2603 = vmatpush1.bf16.xpose.msra.mxu0 0
    %2604 = vmatprep.subr.bf16.mxu0 0
    %2605 = vmatpush1.bf16.xpose.msra.mxu0 0
    %2606 = vmatprep.subr.bf16.mxu0 0
    %2607 = vmatpush1.bf16.xpose.msra.mxu0 0
    %2608 = vmatprep.subr.bf16.mxu0 0
    %2609 = vmatpush1.bf16.xpose.msra.mxu0 0
    %2610 = vmatprep.subr.bf16.mxu0 0
    %2611 = vmatpush1.bf16.xpose.msra.mxu0 0
    %2612 = vmatprep.subr.bf16.mxu0 0
    %2613 = vmatpush1.bf16.xpose.msra.mxu0 0
    %2614 = vmatprep.subr.bf16.mxu0 0
    %2615 = vmatpush1.bf16.xpose.msra.mxu0 0
    %2616 = vmatprep.subr.bf16.mxu0 0
    %2617 = vmatpush1.bf16.xpose.msra.mxu0 0
    %2618 = vmatprep.subr.bf16.mxu0 0
    %2619 = vmatpush1.bf16.xpose.msra.mxu0 0
    %2620 = vmatprep.subr.bf16.mxu0 0
    %2621 = vmatpush1.bf16.xpose.msra.mxu0 0
    %2622 = vmatprep.subr.bf16.mxu0 0
    %2623 = vmatpush1.bf16.xpose.msra.mxu0 0
    %2624 = vmatprep.subr.bf16.mxu0 0
    %2625 = vmatpush1.bf16.xpose.msra.mxu0 0
    %2626 = vmatprep.subr.bf16.mxu0 0
    %2627 = vmatpush1.bf16.xpose.msra.mxu0 0
    %2628 = vmatprep.subr.bf16.mxu0 0
    %2629 = vmatpush1.bf16.xpose.msra.mxu0 0
    %2630 = vmatprep.subr.bf16.mxu0 0
    %2631 = vmatpush1.bf16.xpose.msra.mxu0 0
    %2632 = vmatprep.mubr.bf16.mxu0 %v2036
    %2633 = vmatmul.mubr.bf16.gmra.mrb[0].mxu0 %v2035
    %v2634 = vpop.f32.mrb[0].mxu0
    %v2635 = vadd.f32 %v2594, %v2634
    %v2636 = vpop.f32.mrb[0].mxu0
    %v2637 = vpop.f32.mrb[0].mxu0
    %v2638 = vadd.f32 %v2597, %v2637
    %v2639 = vpop.f32.mrb[0].mxu0
    %2640 = vdwg.mxu0
    %2641 = vmatprep.subr.bf16.mxu0 %v2165
    %2642 = vmatpush1.bf16.xpose.msra.mxu0 %v2164
    %2643 = vmatprep.subr.bf16.mxu0 0
    %2644 = vmatpush1.bf16.xpose.msra.mxu0 0
    %2645 = vmatprep.subr.bf16.mxu0 0
    %2646 = vmatpush1.bf16.xpose.msra.mxu0 0
    %2647 = vmatprep.subr.bf16.mxu0 0
    %2648 = vmatpush1.bf16.xpose.msra.mxu0 0
    %2649 = vmatprep.subr.bf16.mxu0 0
    %2650 = vmatpush1.bf16.xpose.msra.mxu0 0
    %2651 = vmatprep.subr.bf16.mxu0 0
    %2652 = vmatpush1.bf16.xpose.msra.mxu0 0
    %2653 = vmatprep.subr.bf16.mxu0 0
    %2654 = vmatpush1.bf16.xpose.msra.mxu0 0
    %2655 = vmatprep.subr.bf16.mxu0 0
    %2656 = vmatpush1.bf16.xpose.msra.mxu0 0
    %2657 = vmatprep.subr.bf16.mxu0 0
    %2658 = vmatpush1.bf16.xpose.msra.mxu0 0
    %2659 = vmatprep.subr.bf16.mxu0 0
    %2660 = vmatpush1.bf16.xpose.msra.mxu0 0
    %2661 = vmatprep.subr.bf16.mxu0 0
    %2662 = vmatpush1.bf16.xpose.msra.mxu0 0
    %2663 = vmatprep.subr.bf16.mxu0 0
    %2664 = vmatpush1.bf16.xpose.msra.mxu0 0
    %2665 = vmatprep.subr.bf16.mxu0 0
    %2666 = vmatpush1.bf16.xpose.msra.mxu0 0
    %2667 = vmatprep.subr.bf16.mxu0 0
    %2668 = vmatpush1.bf16.xpose.msra.mxu0 0
    %2669 = vmatprep.subr.bf16.mxu0 0
    %2670 = vmatpush1.bf16.xpose.msra.mxu0 0
    %2671 = vmatprep.subr.bf16.mxu0 0
    %2672 = vmatpush1.bf16.xpose.msra.mxu0 0
    %2673 = vmatprep.mubr.bf16.mxu0 %v2038
    %2674 = vmatmul.mubr.bf16.gmra.mrb[0].mxu0 %v2037
    %v2675 = vpop.f32.mrb[0].mxu0
    %v2676 = vadd.f32 %v2635, %v2675
    %v2677 = vpop.f32.mrb[0].mxu0
    %v2678 = vpop.f32.mrb[0].mxu0
    %v2679 = vadd.f32 %v2638, %v2678
    %v2680 = vpop.f32.mrb[0].mxu0
    %2681 = vdwg.mxu0
    %v2682 = vlaneseq
    %v2683 = vand.u32 %v2682, 127
    %vm2684 = vcmp.lt.s32.totalorder %v2683, 5
    %v2685 = vsel %vm2684, %v2676, -3.4028235e+38
    %v2686 = vsel %vm2684, %v2679, -3.4028235e+38
    %vm2687 = vcmask 130048
    %v2688 = vsel %vm2687, %v2685, -inf
    %2689 = vmax.xlane.f32.xlu0 %v2688
    %v2690 = vpop.xlane.xlu0 %2689
    %v2691 = vsel %vm2687, %v2686, -inf
    %2692 = vmax.xlane.f32.xlu0 %v2691
    %v2693 = vpop.xlane.xlu0 %2692
    %v2694 = vsub.f32 %v2685, %v2690
    %v2695 = vsub.f32 %v2686, %v2693
    %v2696 = vmul.f32 %v2694, 1.442695
    %v2697 = vpow.pop %v2696
    %v2698 = vmul.f32 %v2695, 1.442695
    %v2699 = vpow.pop %v2698
    %v2700 = vsel %vm2687, %v2697, 0.0
    %2701 = vadd.xlane.f32.xlu0 %v2700
    %v2702 = vpop.xlane.xlu0 %2701
    %v2703 = vsel %vm2687, %v2699, 0.0
    %2704 = vadd.xlane.f32.xlu0 %v2703
    %v2705 = vpop.xlane.xlu0 %2704
    %v2706 = vlog2.pop %v2702
    %v2707 = vmul.f32 %v2706, 0.6931472
    %v2708 = vlog2.pop %v2705
    %v2709 = vmul.f32 %v2708, 0.6931472
    %v2710 = vsub.f32 %v2694, %v2707
    %v2711 = vsub.f32 %v2695, %v2709
    %2712 = vst.msk [vmem:[#allocation11] sm:$0xff] %vm2687, %v2710
    %2713 = vst.msk [vmem:[#allocation11 + $0x8] sm:$0xff] %vm2687, %v2711
    // Predicated region
    $region50: #{tpu_custom_call.1} parent=1 // pred_check
      _
    $region51: #{tpu_custom_call.1} parent=1 // pred_check_branch
      %2715 = sbr.rel (0) target = $region53
    $region52: #{tpu_custom_call.1} parent=1 // pred_region
      %s2717 = ssub.s32 256, 256
      %2718 = vsyncadd [#allocation4], %s2717
      %s2719 = sshll.u32 [#allocation11], 4
      %s2720 = int_to_ptr.vmem [resolvable:$true] %s2719
      %2725 = dma.vmem_to_hbm [thread:$0]  %s2720, 256, %s7, [#allocation4], 128, 128, 8
    $region53: #{tpu_custom_call.1} parent=1 // pred_fallthru
      _
    // Predicated region
    $region54: #{tpu_custom_call.1} parent=1 // pred_check
      _
    $region55: #{tpu_custom_call.1} parent=1 // pred_check_branch
      %2727 = sbr.rel (0) target = $region57
    $region56: #{tpu_custom_call.1} parent=1 // pred_region
      %2728 = dma.done [#allocation4], 256
    $region57: #{tpu_custom_call.1} parent=1 // pred_fallthru
      _
    %2729 = vsyncpa [#allocation3], 1
    %2730 = vsyncpa [#allocation6], 1
    %2731 = vsyncpa [#allocation9], 1
    %2732 = vsyncpa [#allocation4], 1

</llo_original>
